<compile_context>
chip_gen: v6e
topology: v6e:2x2x1
jax: 0.10.0
libtpu: 0.0.40
codegen_flags: <defaults>
</compile_context>

<pallas_src>
import jax
import jax.numpy as jnp
from jax.experimental import pallas as pl
from jax.experimental.pallas import tpu as pltpu

LANE = 128


def _round_up(n, m):
    return ((n + m - 1) // m) * m


# ----------------------------------------------------------------------------
# Kernel: one batch tile of the whole VAE forward.
#   h      = relu(x @ W1 + b1)
#   [mu|lv]= h @ Wmlv + bmlv          (single fused matmul, lane-aligned split)
#   z      = mu + eps * exp(0.5 * lv)
#   recon  = sigmoid(relu(z @ W2 + b2) @ W3 + b3)
# All feature axes are padded to 128 lanes; mu occupies lanes [0, Lp) and
# logvar lanes [Lp, 2Lp) of the fused output (a tile-aligned, free split).
# ----------------------------------------------------------------------------
def vae_forward_kernel(
    x_ref, eps_ref,
    w1_ref, b1_ref,
    wmlv_ref, bmlv_ref,
    w2_ref, b2_ref,
    w3_ref, b3_ref,
    recon_ref, mlv_ref,
):
    bf16 = jnp.bfloat16

    # ---- encoder: h = relu(x @ W1 + b1) ------------------------------------
    x = x_ref[...].astype(bf16)
    h = jnp.dot(x, w1_ref[...], preferred_element_type=jnp.float32) + b1_ref[...]
    h = jnp.maximum(h, 0.0)

    # ---- fused mu/logvar projection (single MXU matmul) ---------------------
    mlv = jnp.dot(h.astype(bf16), wmlv_ref[...],
                  preferred_element_type=jnp.float32) + bmlv_ref[...]
    mlv_ref[...] = mlv  # lane-dense [TB, 2*Lp] store; split in the wrapper

    Lp = mlv.shape[-1] // 2            # static; 128-aligned split -> no relayout
    mu = mlv[:, :Lp]
    logvar = mlv[:, Lp:]

    # ---- reparameterize: z = mu + eps * exp(0.5 * logvar) -------------------
    # padded lanes: logvar = 0 -> std = 1, eps = 0 -> z = 0 (finite everywhere)
    std = jnp.exp(0.5 * logvar)
    z = mu + eps_ref[...] * std

    # ---- decoder: recon = sigmoid(relu(z @ W2 + b2) @ W3 + b3) --------------
    h2 = jnp.dot(z.astype(bf16), w2_ref[...],
                 preferred_element_type=jnp.float32) + b2_ref[...]
    h2 = jnp.maximum(h2, 0.0)
    logits = jnp.dot(h2.astype(bf16), w3_ref[...],
                     preferred_element_type=jnp.float32) + b3_ref[...]
    # reciprocal on the EUP slot (exp already EUP) instead of a VALU divide
    recon_ref[...] = pl.reciprocal(1.0 + jnp.exp(-logits), approx=True)


# ----------------------------------------------------------------------------
# Parameter packing: pad to 128-lane multiples, fuse mu/logvar, cast to bf16.
# Weights are stored as [in_features, out_features] (transposed vs. PyTorch).
# ----------------------------------------------------------------------------
def pack_params(p, input_dim, hidden_dim, latent_dim):
    Dp = _round_up(input_dim, LANE)
    Hp = _round_up(hidden_dim, LANE)
    Lp = _round_up(latent_dim, LANE)

    def pad_w(w, rows, cols):
        return jnp.zeros((rows, cols), jnp.float32).at[:w.shape[0], :w.shape[1]].set(w)

    def pad_b(b, cols):
        return jnp.zeros((1, cols), jnp.float32).at[:, :b.shape[1]].set(b)

    w1 = pad_w(p["w1"], Dp, Hp)
    b1 = pad_b(p["b1"], Hp)

    # fused [mu | logvar] projection: mu cols in [0, Lp), logvar cols in [Lp, 2Lp)
    wmlv = jnp.zeros((Hp, 2 * Lp), jnp.float32)
    wmlv = wmlv.at[:hidden_dim, :latent_dim].set(p["wmu"])
    wmlv = wmlv.at[:hidden_dim, Lp:Lp + latent_dim].set(p["wlv"])
    bmlv = jnp.zeros((1, 2 * Lp), jnp.float32)
    bmlv = bmlv.at[:, :latent_dim].set(p["bmu"])
    bmlv = bmlv.at[:, Lp:Lp + latent_dim].set(p["blv"])

    w2 = pad_w(p["w2"], Lp, Hp)
    b2 = pad_b(p["b2"], Hp)
    w3 = pad_w(p["w3"], Hp, Dp)
    b3 = pad_b(p["b3"], Dp)

    bf = jnp.bfloat16
    return dict(
        w1=w1.astype(bf), b1=b1,
        wmlv=wmlv.astype(bf), bmlv=bmlv,
        w2=w2.astype(bf), b2=b2,
        w3=w3.astype(bf), b3=b3,
        dims=(input_dim, hidden_dim, latent_dim, Dp, Hp, Lp),
    )


# ----------------------------------------------------------------------------
# Wrapper: pad batch + feature axes, run batch-tiled grid, slice results back.
# ----------------------------------------------------------------------------
def vae_forward(x, eps, packed, tb=128):
    """x: [B, input_dim] f32, eps: [B, latent_dim] f32 (pre-drawn N(0,1) noise)."""
    input_dim, hidden_dim, latent_dim, Dp, Hp, Lp = packed["dims"]
    B = x.shape[0]
    assert tb % 8 == 0, "batch tile must be a sublane multiple"
    Bp = _round_up(max(B, 1), tb)

    # zero-pad: padded rows/lanes flow through as exact zeros (finite everywhere)
    xp = jnp.zeros((Bp, Dp), jnp.float32).at[:B, :input_dim].set(x)
    epsp = jnp.zeros((Bp, Lp), jnp.float32).at[:B, :latent_dim].set(eps)

    grid = (Bp // tb,)

    def batch_spec(cols):
        return pl.BlockSpec((tb, cols), lambda i: (i, 0))

    def resident_spec(shape):  # constant index_map -> stays in VMEM across steps
        return pl.BlockSpec(shape, lambda i: (0, 0))

    in_specs = [
        batch_spec(Dp),                         # x tile
        batch_spec(Lp),                         # eps tile
        resident_spec((Dp, Hp)),                # w1
        resident_spec((1, Hp)),                 # b1
        resident_spec((Hp, 2 * Lp)),            # wmlv
        resident_spec((1, 2 * Lp)),             # bmlv
        resident_spec((Lp, Hp)),                # w2
        resident_spec((1, Hp)),                 # b2
        resident_spec((Hp, Dp)),                # w3
        resident_spec((1, Dp)),                 # b3
    ]
    out_shapes = (
        jax.ShapeDtypeStruct((Bp, Dp), jnp.float32),      # recon (padded)
        jax.ShapeDtypeStruct((Bp, 2 * Lp), jnp.float32),  # [mu | logvar] (padded)
    )
    out_specs = (batch_spec(Dp), batch_spec(2 * Lp))

    recon_pad, mlv_pad = pl.pallas_call(
        vae_forward_kernel,
        out_shape=out_shapes,
        grid=grid,
        in_specs=in_specs,
        out_specs=out_specs,
        compiler_params=pltpu.CompilerParams(
            dimension_semantics=("parallel",),
            vmem_limit_bytes=32 << 20,  # per-tile footprint < 1 MiB; huge headroom
        ),
    )(
        xp, epsp,
        packed["w1"], packed["b1"],
        packed["wmlv"], packed["bmlv"],
        packed["w2"], packed["b2"],
        packed["w3"], packed["b3"],
    )

    recon = recon_pad[:B, :input_dim]
    mu = mlv_pad[:B, :latent_dim]
    logvar = mlv_pad[:B, Lp:Lp + latent_dim]
    return recon, mu, logvar


# ----------------------------------------------------------------------------
# Init + pure-JAX reference (mirrors the kernel's bf16-weight / f32-accum math)
# ----------------------------------------------------------------------------
def init_params(key, input_dim, hidden_dim, latent_dim):
    """nn.Linear-style U(-1/sqrt(fan_in), 1/sqrt(fan_in)); weights [in, out]."""
    def linear(k, fan_in, fan_out):
        kw, kb = jax.random.split(k)
        bound = 1.0 / jnp.sqrt(fan_in)
        w = jax.random.uniform(kw, (fan_in, fan_out), jnp.float32, -bound, bound)
        b = jax.random.uniform(kb, (1, fan_out), jnp.float32, -bound, bound)
        return w, b

    k1, k2, k3, k4, k5 = jax.random.split(key, 5)
    w1, b1 = linear(k1, input_dim, hidden_dim)
    wmu, bmu = linear(k2, hidden_dim, latent_dim)
    wlv, blv = linear(k3, hidden_dim, latent_dim)
    w2, b2 = linear(k4, latent_dim, hidden_dim)
    w3, b3 = linear(k5, hidden_dim, input_dim)
    return dict(w1=w1, b1=b1, wmu=wmu, bmu=bmu, wlv=wlv, blv=blv,
                w2=w2, b2=b2, w3=w3, b3=b3)


def vae_forward_ref(x, eps, p):
    """Reference of the PyTorch forward with the same bf16-in / f32-accum dots."""
    bf = jnp.bfloat16

    def mm(a, w):
        return jnp.dot(a.astype(bf), w.astype(bf), preferred_element_type=jnp.float32)

    h = jnp.maximum(mm(x, p["w1"]) + p["b1"], 0.0)
    mu = mm(h, p["wmu"]) + p["bmu"]
    logvar = mm(h, p["wlv"]) + p["blv"]
    z = mu + eps * jnp.exp(0.5 * logvar)
    h2 = jnp.maximum(mm(z, p["w2"]) + p["b2"], 0.0)
    recon = jax.nn.sigmoid(mm(h2, p["w3"]) + p["b3"])
    return recon, mu, logvar


if __name__ == "__main__":
    B, INPUT_DIM, HIDDEN_DIM, LATENT_DIM = 256, 16, 32, 8
    TB = 128  # 2 grid steps -> pipelined DMA + megacore / 2-TC sharding

    key = jax.random.PRNGKey(0)
    kx, keps, kp = jax.random.split(key, 3)

    x = jax.random.normal(kx, (B, INPUT_DIM), jnp.float32)
    # eps ~ N(0,1) drawn outside the kernel (matches torch.randn_like semantics;
    # bitwise RNG parity with PyTorch is not possible / not required).
    # TODO(synk): in-kernel eps via pltpu.prng_* would remove this input but
    # cannot match torch RNG anyway, so the noise is passed in explicitly.
    eps = jax.random.normal(keps, (B, LATENT_DIM), jnp.float32)

    params = init_params(kp, INPUT_DIM, HIDDEN_DIM, LATENT_DIM)
    packed = pack_params(params, INPUT_DIM, HIDDEN_DIM, LATENT_DIM)

    recon, mu, logvar = vae_forward(x, eps, packed, tb=TB)
    jax.block_until_ready((recon, mu, logvar))

    # correctness check vs. pure-JAX reference (same dtypes; approx-reciprocal
    # sigmoid and padded-MXU accumulation order account for the tolerance)
    r_ref, mu_ref, lv_ref = vae_forward_ref(x, eps, params)
    assert jnp.allclose(mu, mu_ref, atol=1e-2, rtol=1e-2), "mu mismatch"
    assert jnp.allclose(logvar, lv_ref, atol=1e-2, rtol=1e-2), "logvar mismatch"
    assert jnp.allclose(recon, r_ref, atol=1e-2, rtol=1e-2), "recon mismatch"

    print("KERNEL_OK")
</pallas_src>

<mosaic_0001>
module attributes {stable_mosaic.version = 11 : i64} {
  func.func @vae_forward_kernel(%arg0: i32, %arg1: memref<128x128xf32, #tpu.memory_space<vmem>>, %arg2: memref<128x128xf32, #tpu.memory_space<vmem>>, %arg3: memref<128x128xbf16, #tpu.memory_space<vmem>>, %arg4: memref<1x128xf32, #tpu.memory_space<vmem>>, %arg5: memref<128x256xbf16, #tpu.memory_space<vmem>>, %arg6: memref<1x256xf32, #tpu.memory_space<vmem>>, %arg7: memref<128x128xbf16, #tpu.memory_space<vmem>>, %arg8: memref<1x128xf32, #tpu.memory_space<vmem>>, %arg9: memref<128x128xbf16, #tpu.memory_space<vmem>>, %arg10: memref<1x128xf32, #tpu.memory_space<vmem>>, %arg11: memref<128x128xf32, #tpu.memory_space<vmem>>, %arg12: memref<128x256xf32, #tpu.memory_space<vmem>>) attributes {dimension_semantics = [#tpu.dimension_semantics<parallel>], iteration_bounds = array<i64: 2>, scalar_prefetch = 0 : i64, scratch_operands = 0 : i64, tpu.core_type = #tpu.core_type<tc>, window_params = [{transform_indices = @transform_0, window_bounds = array<i64: 128, 128>}, {transform_indices = @transform_1, window_bounds = array<i64: 128, 128>}, {pipeline_mode = #tpu.pipeline_mode<synchronous>, transform_indices = @transform_2, window_bounds = array<i64: 128, 128>}, {pipeline_mode = #tpu.pipeline_mode<synchronous>, transform_indices = @transform_3, window_bounds = array<i64: 1, 128>}, {pipeline_mode = #tpu.pipeline_mode<synchronous>, transform_indices = @transform_4, window_bounds = array<i64: 128, 256>}, {pipeline_mode = #tpu.pipeline_mode<synchronous>, transform_indices = @transform_5, window_bounds = array<i64: 1, 256>}, {pipeline_mode = #tpu.pipeline_mode<synchronous>, transform_indices = @transform_6, window_bounds = array<i64: 128, 128>}, {pipeline_mode = #tpu.pipeline_mode<synchronous>, transform_indices = @transform_7, window_bounds = array<i64: 1, 128>}, {pipeline_mode = #tpu.pipeline_mode<synchronous>, transform_indices = @transform_8, window_bounds = array<i64: 128, 128>}, {pipeline_mode = #tpu.pipeline_mode<synchronous>, transform_indices = @transform_9, window_bounds = array<i64: 1, 128>}, {transform_indices = @transform_10, window_bounds = array<i64: 128, 128>}, {transform_indices = @transform_11, window_bounds = array<i64: 128, 256>}]} {
    %c0 = arith.constant 0 : index
    %c0_0 = arith.constant 0 : index
    %0 = vector.load %arg1[%c0, %c0_0] : memref<128x128xf32, #tpu.memory_space<vmem>>, vector<128x128xf32>
    %1 = arith.truncf %0 : vector<128x128xf32> to vector<128x128xbf16>
    %c0_1 = arith.constant 0 : index
    %c0_2 = arith.constant 0 : index
    %2 = vector.load %arg3[%c0_1, %c0_2] : memref<128x128xbf16, #tpu.memory_space<vmem>>, vector<128x128xbf16>
    %cst = arith.constant dense<0.000000e+00> : vector<128x128xf32>
    %3 = tpu.matmul %1, %2, %cst {dimension_numbers = #tpu.dot_dimension_numbers<[1], [0], [0], [1], [0, 0, 1, 1], [], []>} : vector<128x128xbf16>, vector<128x128xbf16>, vector<128x128xf32> -> vector<128x128xf32>
    %c0_3 = arith.constant 0 : index
    %c0_4 = arith.constant 0 : index
    %4 = vector.load %arg4[%c0_3, %c0_4] : memref<1x128xf32, #tpu.memory_space<vmem>>, vector<1x128xf32>
    %5 = vector.broadcast %4 : vector<1x128xf32> to vector<128x128xf32>
    %6 = arith.addf %3, %5 : vector<128x128xf32>
    %cst_5 = arith.constant 0.000000e+00 : f32
    %7 = vector.broadcast %cst_5 : f32 to vector<128x128xf32>
    %8 = arith.maximumf %6, %7 : vector<128x128xf32>
    %9 = arith.truncf %8 : vector<128x128xf32> to vector<128x128xbf16>
    %c0_6 = arith.constant 0 : index
    %c0_7 = arith.constant 0 : index
    %10 = vector.load %arg5[%c0_6, %c0_7] : memref<128x256xbf16, #tpu.memory_space<vmem>>, vector<128x256xbf16>
    %cst_8 = arith.constant dense<0.000000e+00> : vector<128x256xf32>
    %11 = tpu.matmul %9, %10, %cst_8 {dimension_numbers = #tpu.dot_dimension_numbers<[1], [0], [0], [1], [0, 0, 1, 1], [], []>} : vector<128x128xbf16>, vector<128x256xbf16>, vector<128x256xf32> -> vector<128x256xf32>
    %c0_9 = arith.constant 0 : index
    %c0_10 = arith.constant 0 : index
    %12 = vector.load %arg6[%c0_9, %c0_10] : memref<1x256xf32, #tpu.memory_space<vmem>>, vector<1x256xf32>
    %13 = vector.broadcast %12 : vector<1x256xf32> to vector<128x256xf32>
    %14 = arith.addf %11, %13 : vector<128x256xf32>
    %c0_11 = arith.constant 0 : index
    %c0_12 = arith.constant 0 : index
    %15 = vector.load %arg12[%c0_11, %c0_12] : memref<128x256xf32, #tpu.memory_space<vmem>>, vector<128x256xf32>
    tpu.vector_store %arg12[%c0_11, %c0_12], %14 {strides = array<i32>} : memref<128x256xf32, #tpu.memory_space<vmem>>, vector<128x256xf32>,
    %16 = vector.extract_strided_slice %14 {offsets = [0, 0], sizes = [128, 128], strides = [1, 1]} : vector<128x256xf32> to vector<128x128xf32>
    %17 = vector.extract_strided_slice %14 {offsets = [0, 128], sizes = [128, 128], strides = [1, 1]} : vector<128x256xf32> to vector<128x128xf32>
    %cst_13 = arith.constant 5.000000e-01 : f32
    %18 = vector.broadcast %cst_13 : f32 to vector<128x128xf32>
    %19 = arith.mulf %18, %17 : vector<128x128xf32>
    %20 = math.exp %19 : vector<128x128xf32>
    %c0_14 = arith.constant 0 : index
    %c0_15 = arith.constant 0 : index
    %21 = vector.load %arg2[%c0_14, %c0_15] : memref<128x128xf32, #tpu.memory_space<vmem>>, vector<128x128xf32>
    %22 = arith.mulf %21, %20 : vector<128x128xf32>
    %23 = arith.addf %16, %22 : vector<128x128xf32>
    %24 = arith.truncf %23 : vector<128x128xf32> to vector<128x128xbf16>
    %c0_16 = arith.constant 0 : index
    %c0_17 = arith.constant 0 : index
    %25 = vector.load %arg7[%c0_16, %c0_17] : memref<128x128xbf16, #tpu.memory_space<vmem>>, vector<128x128xbf16>
    %cst_18 = arith.constant dense<0.000000e+00> : vector<128x128xf32>
    %26 = tpu.matmul %24, %25, %cst_18 {dimension_numbers = #tpu.dot_dimension_numbers<[1], [0], [0], [1], [0, 0, 1, 1], [], []>} : vector<128x128xbf16>, vector<128x128xbf16>, vector<128x128xf32> -> vector<128x128xf32>
    %c0_19 = arith.constant 0 : index
    %c0_20 = arith.constant 0 : index
    %27 = vector.load %arg8[%c0_19, %c0_20] : memref<1x128xf32, #tpu.memory_space<vmem>>, vector<1x128xf32>
    %28 = vector.broadcast %27 : vector<1x128xf32> to vector<128x128xf32>
    %29 = arith.addf %26, %28 : vector<128x128xf32>
    %cst_21 = arith.constant 0.000000e+00 : f32
    %30 = vector.broadcast %cst_21 : f32 to vector<128x128xf32>
    %31 = arith.maximumf %29, %30 : vector<128x128xf32>
    %32 = arith.truncf %31 : vector<128x128xf32> to vector<128x128xbf16>
    %c0_22 = arith.constant 0 : index
    %c0_23 = arith.constant 0 : index
    %33 = vector.load %arg9[%c0_22, %c0_23] : memref<128x128xbf16, #tpu.memory_space<vmem>>, vector<128x128xbf16>
    %cst_24 = arith.constant dense<0.000000e+00> : vector<128x128xf32>
    %34 = tpu.matmul %32, %33, %cst_24 {dimension_numbers = #tpu.dot_dimension_numbers<[1], [0], [0], [1], [0, 0, 1, 1], [], []>} : vector<128x128xbf16>, vector<128x128xbf16>, vector<128x128xf32> -> vector<128x128xf32>
    %c0_25 = arith.constant 0 : index
    %c0_26 = arith.constant 0 : index
    %35 = vector.load %arg10[%c0_25, %c0_26] : memref<1x128xf32, #tpu.memory_space<vmem>>, vector<1x128xf32>
    %36 = vector.broadcast %35 : vector<1x128xf32> to vector<128x128xf32>
    %37 = arith.addf %34, %36 : vector<128x128xf32>
    %cst_27 = arith.constant 0.000000e+00 : f32
    %38 = vector.broadcast %cst_27 : f32 to vector<128x128xf32>
    %39 = arith.subf %38, %37 : vector<128x128xf32>
    %40 = math.exp %39 : vector<128x128xf32>
    %cst_28 = arith.constant 1.000000e+00 : f32
    %41 = vector.broadcast %cst_28 : f32 to vector<128x128xf32>
    %42 = arith.addf %41, %40 : vector<128x128xf32>
    %43 = tpu.reciprocal %42 {approx = true} : vector<128x128xf32> -> vector<128x128xf32>
    %c0_29 = arith.constant 0 : index
    %c0_30 = arith.constant 0 : index
    %44 = vector.load %arg11[%c0_29, %c0_30] : memref<128x128xf32, #tpu.memory_space<vmem>>, vector<128x128xf32>
    tpu.vector_store %arg11[%c0_29, %c0_30], %43 {strides = array<i32>} : memref<128x128xf32, #tpu.memory_space<vmem>>, vector<128x128xf32>,
    return
  }
  func.func @transform_0(%arg0: i32) -> (i32, i32) {
    %c0_i32 = arith.constant 0 : i32
    %c0_i32_0 = arith.constant 0 : i32
    return %arg0, %c0_i32 : i32, i32
  }
  func.func @transform_1(%arg0: i32) -> (i32, i32) {
    %c0_i32 = arith.constant 0 : i32
    %c0_i32_0 = arith.constant 0 : i32
    return %arg0, %c0_i32 : i32, i32
  }
  func.func @transform_2(%arg0: i32) -> (i32, i32) {
    %c0_i32 = arith.constant 0 : i32
    %c0_i32_0 = arith.constant 0 : i32
    %c0_i32_1 = arith.constant 0 : i32
    return %c0_i32, %c0_i32_0 : i32, i32
  }
  func.func @transform_3(%arg0: i32) -> (i32, i32) {
    %c0_i32 = arith.constant 0 : i32
    %c0_i32_0 = arith.constant 0 : i32
    %c0_i32_1 = arith.constant 0 : i32
    return %c0_i32, %c0_i32_0 : i32, i32
  }
  func.func @transform_4(%arg0: i32) -> (i32, i32) {
    %c0_i32 = arith.constant 0 : i32
    %c0_i32_0 = arith.constant 0 : i32
    %c0_i32_1 = arith.constant 0 : i32
    return %c0_i32, %c0_i32_0 : i32, i32
  }
  func.func @transform_5(%arg0: i32) -> (i32, i32) {
    %c0_i32 = arith.constant 0 : i32
    %c0_i32_0 = arith.constant 0 : i32
    %c0_i32_1 = arith.constant 0 : i32
    return %c0_i32, %c0_i32_0 : i32, i32
  }
  func.func @transform_6(%arg0: i32) -> (i32, i32) {
    %c0_i32 = arith.constant 0 : i32
    %c0_i32_0 = arith.constant 0 : i32
    %c0_i32_1 = arith.constant 0 : i32
    return %c0_i32, %c0_i32_0 : i32, i32
  }
  func.func @transform_7(%arg0: i32) -> (i32, i32) {
    %c0_i32 = arith.constant 0 : i32
    %c0_i32_0 = arith.constant 0 : i32
    %c0_i32_1 = arith.constant 0 : i32
    return %c0_i32, %c0_i32_0 : i32, i32
  }
  func.func @transform_8(%arg0: i32) -> (i32, i32) {
    %c0_i32 = arith.constant 0 : i32
    %c0_i32_0 = arith.constant 0 : i32
    %c0_i32_1 = arith.constant 0 : i32
    return %c0_i32, %c0_i32_0 : i32, i32
  }
  func.func @transform_9(%arg0: i32) -> (i32, i32) {
    %c0_i32 = arith.constant 0 : i32
    %c0_i32_0 = arith.constant 0 : i32
    %c0_i32_1 = arith.constant 0 : i32
    return %c0_i32, %c0_i32_0 : i32, i32
  }
  func.func @transform_10(%arg0: i32) -> (i32, i32) {
    %c0_i32 = arith.constant 0 : i32
    %c0_i32_0 = arith.constant 0 : i32
    return %arg0, %c0_i32 : i32, i32
  }
  func.func @transform_11(%arg0: i32) -> (i32, i32) {
    %c0_i32 = arith.constant 0 : i32
    %c0_i32_0 = arith.constant 0 : i32
    return %arg0, %c0_i32 : i32, i32
  }
}

</mosaic_0001>

<llo_original>
// kernel: tpu_custom_call.1
$region0: #{tpu_custom_call.1}
  #allocation0 [shape = 'u32[]', space=smem, size = 0x4, offset = 0x4, fixed_abs, tag = 'smem constant byte address 0x4 - core index']
  #allocation1 [shape = 'u32[144,128]{1,0:T(1,128)}', space=vmem, size = 0x12000, scoped, tag = 'internal scratch']
  %s0 = inlined_call_operand.hbm [shape: f32[256,128], index: 0, kind: input, shape index: {}]
  %s1 = inlined_call_operand.hbm [shape: f32[256,128], index: 1, kind: input, shape index: {}]
  %s2 = inlined_call_operand.hbm [shape: bf16[128,128], index: 2, kind: input, shape index: {}]
  %s3 = inlined_call_operand.vmem [shape: f32[1,128], index: 3, kind: input, shape index: {}]
  %s4 = inlined_call_operand.hbm [shape: bf16[128,256], index: 4, kind: input, shape index: {}]
  %s5 = inlined_call_operand.vmem [shape: f32[1,256], index: 5, kind: input, shape index: {}]
  %s6 = inlined_call_operand.hbm [shape: bf16[128,128], index: 6, kind: input, shape index: {}]
  %s7 = inlined_call_operand.vmem [shape: f32[1,128], index: 7, kind: input, shape index: {}]
  %s8 = inlined_call_operand.hbm [shape: bf16[128,128], index: 8, kind: input, shape index: {}]
  %s9 = inlined_call_operand.vmem [shape: f32[1,128], index: 9, kind: input, shape index: {}]
  %s10 = inlined_call_operand.hbm [shape: f32[256,128], index: 10, kind: output, shape index: {0}]
  %s11 = inlined_call_operand.hbm [shape: f32[256,256], index: 11, kind: output, shape index: {1}]
  %12 = xla_tuple %s10, %s11
  %s13 = sld [smem:[#allocation0]]
  $region105: #{tpu_custom_call.1} parent=0
    _
  %s15 = ssub.s32 1, %s13
  %s16 = scalar_select 0, %s15, %s13
  $region1: #{tpu_custom_call.1} parent=0
    #allocation2 [shape = 'u8[131072]{0}', space=vmem, size = 0x20000, scoped, tag = 'input window, operand 0']
    #allocation3 [shape = 's32[2]{0}', space=sflag, size = 0x8, scoped, tag = 'scoped memory for tpu_custom_call.1']
    #allocation4 [shape = 's32[2]{0}', space=sflag, size = 0x8, scoped, tag = 'scoped memory for tpu_custom_call.1']
    #allocation5 [shape = 'u8[131072]{0}', space=vmem, size = 0x20000, scoped, tag = 'input window, operand 1']
    #allocation6 [shape = 's32[2]{0}', space=sflag, size = 0x8, scoped, tag = 'scoped memory for tpu_custom_call.1']
    #allocation7 [shape = 'u8[32768]{0}', space=vmem, size = 0x8000, scoped, tag = 'input window, operand 2, single buffered']
    #allocation8 [shape = 'u8[65536]{0}', space=vmem, size = 0x10000, scoped, tag = 'input window, operand 4, single buffered']
    #allocation9 [shape = 's32[1]{0}', space=sflag, size = 0x4, scoped, tag = 'scoped memory for tpu_custom_call.1']
    #allocation10 [shape = 'u8[32768]{0}', space=vmem, size = 0x8000, scoped, tag = 'input window, operand 6, single buffered']
    #allocation11 [shape = 'u8[32768]{0}', space=vmem, size = 0x8000, scoped, tag = 'input window, operand 8, single buffered']
    #allocation12 [shape = 's32[1]{0}', space=sflag, size = 0x4, scoped, tag = 'scoped memory for tpu_custom_call.1']
    #allocation13 [shape = 'u8[131072]{0}', space=vmem, size = 0x20000, scoped, tag = 'output window, operand 0']
    #allocation14 [shape = 'u8[262144]{0}', space=vmem, size = 0x40000, scoped, tag = 'output window, operand 1']
    #allocation15 [shape = 's32[2]{0}', space=sflag, size = 0x8, scoped, tag = 'scoped memory for tpu_custom_call.1']
    %17 = vsyncpa [#allocation3], 0
    %s18 = scalar_lea.sflag [#allocation3], 1
    %19 = vsyncpa %s18, 0
    %20 = vsyncpa [#allocation6], 0
    %s21 = scalar_lea.sflag [#allocation6], 1
    %22 = vsyncpa %s21, 0
    %23 = vsyncpa [#allocation9], 0
    %24 = vsyncpa [#allocation12], 0
    %25 = vsyncpa [#allocation4], 0
    %s26 = scalar_lea.sflag [#allocation4], 1
    %27 = vsyncpa %s26, 0
    %28 = vsyncpa [#allocation15], 0
    %s29 = scalar_lea.sflag [#allocation15], 1
    %30 = vsyncpa %s29, 0
    loop: start=0, step=1, limit=4
    $region2: #{tpu_custom_call.1} parent=1 // loop_pre_header
      _
    $region3: #{tpu_custom_call.1} parent=1 // loop_header
      %s32 = sphi 0, %s36
      %p33 = scmp.ge.s32.totalorder %s32, 4
      %s42 = sphi 0, %s44
      %s45 = sphi 0, %s42
      %s46 = sphi 0, %s45
      %s62 = sphi 0, %s46
      %s68 = sphi 0, %s70
      %s71 = sphi 0, %s68
      %s72 = sphi 0, %s71
      %s88 = sphi 0, %s72
      %s92 = sphi 0, %s92
      %s94 = sphi 0, %s92
      %s95 = sphi 0, %s94
      %s109 = sphi 0, %s95
      %s113 = sphi 0, %s113
      %s115 = sphi 0, %s113
      %s116 = sphi 0, %s115
      %s130 = sphi 0, %s116
      %s134 = sphi 0, %s134
      %s136 = sphi 0, %s134
      %s137 = sphi 0, %s136
      %s151 = sphi 0, %s137
      %s155 = sphi 0, %s155
      %s157 = sphi 0, %s155
      %s158 = sphi 0, %s157
      %s172 = sphi 0, %s158
      %s176 = sphi 0, %s176
      %s178 = sphi 0, %s176
      %s179 = sphi 0, %s178
      %s193 = sphi 0, %s179
      %s197 = sphi 0, %s197
      %s199 = sphi 0, %s197
      %s200 = sphi 0, %s199
      %s214 = sphi 0, %s200
      %s218 = sphi 0, %s218
      %s220 = sphi 0, %s218
      %s221 = sphi 0, %s220
      %s235 = sphi 0, %s221
      %s239 = sphi 0, %s239
      %s241 = sphi 0, %s239
      %s242 = sphi 0, %s241
      %s256 = sphi 0, %s242
      %s262 = sphi 0, %s264
      %s265 = sphi 0, %s262
      %s266 = sphi 0, %s265
      %s282 = sphi 0, %s266
      %s288 = sphi 0, %s290
      %s291 = sphi 0, %s288
      %s292 = sphi 0, %s291
      %s308 = sphi 0, %s292
    $region4: #{tpu_custom_call.1} parent=1 // loop_header_branch
      %35 = sbr.rel (%p33) target = $region8
    $region5: #{tpu_custom_call.1} parent=1 // loop_body
      %s37 = ssub.s32 %s32, 1
      %s38 = ssub.s32 %s32, 2
      %s39 = sadd.s32 %s32, 1
      %s40 = ssub.s32 %s32, %s39
      %p41 = scmp.eq.s32.totalorder %s40, 0
      %s43 = sadd.s32 %s42, 1
      %s44 = scalar_select %p41, %s42, %s43
      %p47 = pneg %p41
      %p48 = scmp.eq.s32.totalorder %s32, 1
      %p49 = por %p47, %p48
      %p50 = scmp.ne.s32.totalorder %s42, %s45
      %p51 = scmp.eq.s32.totalorder %s32, 0
      %p52 = por %p50, %p51
      %p53 = scmp.ne.s32.totalorder %s42, %s45
      %p54 = scmp.eq.s32.totalorder %s37, 1
      %p55 = por %p53, %p54
      %p56 = scmp.ne.s32.totalorder %s45, %s46
      %p57 = scmp.eq.s32.totalorder %s37, 0
      %p58 = por %p56, %p57
      %p59 = scmp.ne.s32.totalorder %s45, %s46
      %p60 = scmp.eq.s32.totalorder %s38, 1
      %p61 = por %p59, %p60
      %p63 = scmp.ne.s32.totalorder %s46, %s62
      %p64 = scmp.eq.s32.totalorder %s38, 0
      %p65 = por %p63, %p64
      %s66 = ssub.s32 %s32, %s39
      %p67 = scmp.eq.s32.totalorder %s66, 0
      %s69 = sadd.s32 %s68, 1
      %s70 = scalar_select %p67, %s68, %s69
      %p73 = pneg %p67
      %p74 = scmp.eq.s32.totalorder %s32, 1
      %p75 = por %p73, %p74
      %p76 = scmp.ne.s32.totalorder %s68, %s71
      %p77 = scmp.eq.s32.totalorder %s32, 0
      %p78 = por %p76, %p77
      %p79 = scmp.ne.s32.totalorder %s68, %s71
      %p80 = scmp.eq.s32.totalorder %s37, 1
      %p81 = por %p79, %p80
      %p82 = scmp.ne.s32.totalorder %s71, %s72
      %p83 = scmp.eq.s32.totalorder %s37, 0
      %p84 = por %p82, %p83
      %p85 = scmp.ne.s32.totalorder %s71, %s72
      %p86 = scmp.eq.s32.totalorder %s38, 1
      %p87 = por %p85, %p86
      %p89 = scmp.ne.s32.totalorder %s72, %s88
      %p90 = scmp.eq.s32.totalorder %s38, 0
      %p91 = por %p89, %p90
      %s93 = sadd.s32 %s92, 1
      %p96 = scmp.eq.s32.totalorder %s32, 1
      %p97 = scmp.ne.s32.totalorder %s92, %s94
      %p98 = scmp.eq.s32.totalorder %s32, 0
      %p99 = por %p97, %p98
      %p100 = scmp.ne.s32.totalorder %s92, %s94
      %p101 = scmp.eq.s32.totalorder %s37, 1
      %p102 = por %p100, %p101
      %p103 = scmp.ne.s32.totalorder %s94, %s95
      %p104 = scmp.eq.s32.totalorder %s37, 0
      %p105 = por %p103, %p104
      %p106 = scmp.ne.s32.totalorder %s94, %s95
      %p107 = scmp.eq.s32.totalorder %s38, 1
      %p108 = por %p106, %p107
      %p110 = scmp.ne.s32.totalorder %s95, %s109
      %p111 = scmp.eq.s32.totalorder %s38, 0
      %p112 = por %p110, %p111
      %s114 = sadd.s32 %s113, 1
      %p117 = scmp.eq.s32.totalorder %s32, 1
      %p118 = scmp.ne.s32.totalorder %s113, %s115
      %p119 = scmp.eq.s32.totalorder %s32, 0
      %p120 = por %p118, %p119
      %p121 = scmp.ne.s32.totalorder %s113, %s115
      %p122 = scmp.eq.s32.totalorder %s37, 1
      %p123 = por %p121, %p122
      %p124 = scmp.ne.s32.totalorder %s115, %s116
      %p125 = scmp.eq.s32.totalorder %s37, 0
      %p126 = por %p124, %p125
      %p127 = scmp.ne.s32.totalorder %s115, %s116
      %p128 = scmp.eq.s32.totalorder %s38, 1
      %p129 = por %p127, %p128
      %p131 = scmp.ne.s32.totalorder %s116, %s130
      %p132 = scmp.eq.s32.totalorder %s38, 0
      %p133 = por %p131, %p132
      %s135 = sadd.s32 %s134, 1
      %p138 = scmp.eq.s32.totalorder %s32, 1
      %p139 = scmp.ne.s32.totalorder %s134, %s136
      %p140 = scmp.eq.s32.totalorder %s32, 0
      %p141 = por %p139, %p140
      %p142 = scmp.ne.s32.totalorder %s134, %s136
      %p143 = scmp.eq.s32.totalorder %s37, 1
      %p144 = por %p142, %p143
      %p145 = scmp.ne.s32.totalorder %s136, %s137
      %p146 = scmp.eq.s32.totalorder %s37, 0
      %p147 = por %p145, %p146
      %p148 = scmp.ne.s32.totalorder %s136, %s137
      %p149 = scmp.eq.s32.totalorder %s38, 1
      %p150 = por %p148, %p149
      %p152 = scmp.ne.s32.totalorder %s137, %s151
      %p153 = scmp.eq.s32.totalorder %s38, 0
      %p154 = por %p152, %p153
      %s156 = sadd.s32 %s155, 1
      %p159 = scmp.eq.s32.totalorder %s32, 1
      %p160 = scmp.ne.s32.totalorder %s155, %s157
      %p161 = scmp.eq.s32.totalorder %s32, 0
      %p162 = por %p160, %p161
      %p163 = scmp.ne.s32.totalorder %s155, %s157
      %p164 = scmp.eq.s32.totalorder %s37, 1
      %p165 = por %p163, %p164
      %p166 = scmp.ne.s32.totalorder %s157, %s158
      %p167 = scmp.eq.s32.totalorder %s37, 0
      %p168 = por %p166, %p167
      %p169 = scmp.ne.s32.totalorder %s157, %s158
      %p170 = scmp.eq.s32.totalorder %s38, 1
      %p171 = por %p169, %p170
      %p173 = scmp.ne.s32.totalorder %s158, %s172
      %p174 = scmp.eq.s32.totalorder %s38, 0
      %p175 = por %p173, %p174
      %s177 = sadd.s32 %s176, 1
      %p180 = scmp.eq.s32.totalorder %s32, 1
      %p181 = scmp.ne.s32.totalorder %s176, %s178
      %p182 = scmp.eq.s32.totalorder %s32, 0
      %p183 = por %p181, %p182
      %p184 = scmp.ne.s32.totalorder %s176, %s178
      %p185 = scmp.eq.s32.totalorder %s37, 1
      %p186 = por %p184, %p185
      %p187 = scmp.ne.s32.totalorder %s178, %s179
      %p188 = scmp.eq.s32.totalorder %s37, 0
      %p189 = por %p187, %p188
      %p190 = scmp.ne.s32.totalorder %s178, %s179
      %p191 = scmp.eq.s32.totalorder %s38, 1
      %p192 = por %p190, %p191
      %p194 = scmp.ne.s32.totalorder %s179, %s193
      %p195 = scmp.eq.s32.totalorder %s38, 0
      %p196 = por %p194, %p195
      %s198 = sadd.s32 %s197, 1
      %p201 = scmp.eq.s32.totalorder %s32, 1
      %p202 = scmp.ne.s32.totalorder %s197, %s199
      %p203 = scmp.eq.s32.totalorder %s32, 0
      %p204 = por %p202, %p203
      %p205 = scmp.ne.s32.totalorder %s197, %s199
      %p206 = scmp.eq.s32.totalorder %s37, 1
      %p207 = por %p205, %p206
      %p208 = scmp.ne.s32.totalorder %s199, %s200
      %p209 = scmp.eq.s32.totalorder %s37, 0
      %p210 = por %p208, %p209
      %p211 = scmp.ne.s32.totalorder %s199, %s200
      %p212 = scmp.eq.s32.totalorder %s38, 1
      %p213 = por %p211, %p212
      %p215 = scmp.ne.s32.totalorder %s200, %s214
      %p216 = scmp.eq.s32.totalorder %s38, 0
      %p217 = por %p215, %p216
      %s219 = sadd.s32 %s218, 1
      %p222 = scmp.eq.s32.totalorder %s32, 1
      %p223 = scmp.ne.s32.totalorder %s218, %s220
      %p224 = scmp.eq.s32.totalorder %s32, 0
      %p225 = por %p223, %p224
      %p226 = scmp.ne.s32.totalorder %s218, %s220
      %p227 = scmp.eq.s32.totalorder %s37, 1
      %p228 = por %p226, %p227
      %p229 = scmp.ne.s32.totalorder %s220, %s221
      %p230 = scmp.eq.s32.totalorder %s37, 0
      %p231 = por %p229, %p230
      %p232 = scmp.ne.s32.totalorder %s220, %s221
      %p233 = scmp.eq.s32.totalorder %s38, 1
      %p234 = por %p232, %p233
      %p236 = scmp.ne.s32.totalorder %s221, %s235
      %p237 = scmp.eq.s32.totalorder %s38, 0
      %p238 = por %p236, %p237
      %s240 = sadd.s32 %s239, 1
      %p243 = scmp.eq.s32.totalorder %s32, 1
      %p244 = scmp.ne.s32.totalorder %s239, %s241
      %p245 = scmp.eq.s32.totalorder %s32, 0
      %p246 = por %p244, %p245
      %p247 = scmp.ne.s32.totalorder %s239, %s241
      %p248 = scmp.eq.s32.totalorder %s37, 1
      %p249 = por %p247, %p248
      %p250 = scmp.ne.s32.totalorder %s241, %s242
      %p251 = scmp.eq.s32.totalorder %s37, 0
      %p252 = por %p250, %p251
      %p253 = scmp.ne.s32.totalorder %s241, %s242
      %p254 = scmp.eq.s32.totalorder %s38, 1
      %p255 = por %p253, %p254
      %p257 = scmp.ne.s32.totalorder %s242, %s256
      %p258 = scmp.eq.s32.totalorder %s38, 0
      %p259 = por %p257, %p258
      %s260 = ssub.s32 %s32, %s39
      %p261 = scmp.eq.s32.totalorder %s260, 0
      %s263 = sadd.s32 %s262, 1
      %s264 = scalar_select %p261, %s262, %s263
      %p267 = pneg %p261
      %p268 = scmp.eq.s32.totalorder %s32, 1
      %p269 = por %p267, %p268
      %p270 = scmp.ne.s32.totalorder %s262, %s265
      %p271 = scmp.eq.s32.totalorder %s32, 0
      %p272 = por %p270, %p271
      %p273 = scmp.ne.s32.totalorder %s262, %s265
      %p274 = scmp.eq.s32.totalorder %s37, 1
      %p275 = por %p273, %p274
      %p276 = scmp.ne.s32.totalorder %s265, %s266
      %p277 = scmp.eq.s32.totalorder %s37, 0
      %p278 = por %p276, %p277
      %p279 = scmp.ne.s32.totalorder %s265, %s266
      %p280 = scmp.eq.s32.totalorder %s38, 1
      %p281 = por %p279, %p280
      %p283 = scmp.ne.s32.totalorder %s266, %s282
      %p284 = scmp.eq.s32.totalorder %s38, 0
      %p285 = por %p283, %p284
      %s286 = ssub.s32 %s32, %s39
      %p287 = scmp.eq.s32.totalorder %s286, 0
      %s289 = sadd.s32 %s288, 1
      %s290 = scalar_select %p287, %s288, %s289
      %p293 = pneg %p287
      %p294 = scmp.eq.s32.totalorder %s32, 1
      %p295 = por %p293, %p294
      %p296 = scmp.ne.s32.totalorder %s288, %s291
      %p297 = scmp.eq.s32.totalorder %s32, 0
      %p298 = por %p296, %p297
      %p299 = scmp.ne.s32.totalorder %s288, %s291
      %p300 = scmp.eq.s32.totalorder %s37, 1
      %p301 = por %p299, %p300
      %p302 = scmp.ne.s32.totalorder %s291, %s292
      %p303 = scmp.eq.s32.totalorder %s37, 0
      %p304 = por %p302, %p303
      %p305 = scmp.ne.s32.totalorder %s291, %s292
      %p306 = scmp.eq.s32.totalorder %s38, 1
      %p307 = por %p305, %p306
      %p309 = scmp.ne.s32.totalorder %s292, %s308
      %p310 = scmp.eq.s32.totalorder %s38, 0
      %p311 = por %p309, %p310
      %p312 = scmp.le.s32.totalorder 1, %s32
      %p313 = scmp.lt.s32.totalorder %s32, 3
      %p314 = pnand %p312, %p313
      %p315 = pneg %p314
      // Predicated region
      $region9: #{tpu_custom_call.1} parent=5 // pred_check
        _
      $region10: #{tpu_custom_call.1} parent=5 // pred_check_branch
        %317 = sbr.rel (%p314) target = $region12
      $region11: #{tpu_custom_call.1} parent=5 // pred_region
        %s318 = ssub.s32 %s32, 1
        // Predicated region
        $region13: #{tpu_custom_call.1} parent=11 // pred_check
          %p319 = pneg %p105
        $region14: #{tpu_custom_call.1} parent=11 // pred_check_branch
          %321 = sbr.rel (%p319) target = $region16
        $region15: #{tpu_custom_call.1} parent=11 // pred_region
          %s323 = ssub.s32 1024, 1024
          %324 = vsyncadd [#allocation6], %s323
          %s325 = sshll.u32 [#allocation7], 4
          %s326 = int_to_ptr.vmem [resolvable:$true] %s325
          %331 = dma.hbm_to_vmem [thread:$0]  %s2, 1024, %s326, [#allocation6], 64, 64, 4
        $region16: #{tpu_custom_call.1} parent=11 // pred_fallthru
          _
        // Predicated region
        $region17: #{tpu_custom_call.1} parent=11 // pred_check
          %p332 = pneg %p126
        $region18: #{tpu_custom_call.1} parent=11 // pred_check_branch
          %334 = sbr.rel (%p332) target = $region20
        $region19: #{tpu_custom_call.1} parent=11 // pred_region
          _
        $region20: #{tpu_custom_call.1} parent=11 // pred_fallthru
          _
        // Predicated region
        $region21: #{tpu_custom_call.1} parent=11 // pred_check
          %p335 = pneg %p147
        $region22: #{tpu_custom_call.1} parent=11 // pred_check_branch
          %337 = sbr.rel (%p335) target = $region24
        $region23: #{tpu_custom_call.1} parent=11 // pred_region
          %s339 = ssub.s32 2048, 2048
          %340 = vsyncadd [#allocation9], %s339
          %s341 = sshll.u32 [#allocation8], 4
          %s342 = int_to_ptr.vmem [resolvable:$true] %s341
          %347 = dma.hbm_to_vmem [thread:$0]  %s4, 2048, %s342, [#allocation9], 128, 128, 8
        $region24: #{tpu_custom_call.1} parent=11 // pred_fallthru
          _
        // Predicated region
        $region25: #{tpu_custom_call.1} parent=11 // pred_check
          %p348 = pneg %p168
        $region26: #{tpu_custom_call.1} parent=11 // pred_check_branch
          %350 = sbr.rel (%p348) target = $region28
        $region27: #{tpu_custom_call.1} parent=11 // pred_region
          _
        $region28: #{tpu_custom_call.1} parent=11 // pred_fallthru
          _
        // Predicated region
        $region29: #{tpu_custom_call.1} parent=11 // pred_check
          %p351 = pneg %p189
        $region30: #{tpu_custom_call.1} parent=11 // pred_check_branch
          %353 = sbr.rel (%p351) target = $region32
        $region31: #{tpu_custom_call.1} parent=11 // pred_region
          %s355 = ssub.s32 1024, 1024
          %356 = vsyncadd [#allocation9], %s355
          %s357 = sshll.u32 [#allocation10], 4
          %s358 = int_to_ptr.vmem [resolvable:$true] %s357
          %363 = dma.hbm_to_vmem [thread:$0]  %s6, 1024, %s358, [#allocation9], 64, 64, 4
        $region32: #{tpu_custom_call.1} parent=11 // pred_fallthru
          _
        // Predicated region
        $region33: #{tpu_custom_call.1} parent=11 // pred_check
          %p364 = pneg %p210
        $region34: #{tpu_custom_call.1} parent=11 // pred_check_branch
          %366 = sbr.rel (%p364) target = $region36
        $region35: #{tpu_custom_call.1} parent=11 // pred_region
          _
        $region36: #{tpu_custom_call.1} parent=11 // pred_fallthru
          _
        // Predicated region
        $region37: #{tpu_custom_call.1} parent=11 // pred_check
          %p367 = pneg %p231
        $region38: #{tpu_custom_call.1} parent=11 // pred_check_branch
          %369 = sbr.rel (%p367) target = $region40
        $region39: #{tpu_custom_call.1} parent=11 // pred_region
          %s371 = ssub.s32 1024, 1024
          %372 = vsyncadd [#allocation12], %s371
          %s373 = sshll.u32 [#allocation11], 4
          %s374 = int_to_ptr.vmem [resolvable:$true] %s373
          %379 = dma.hbm_to_vmem [thread:$0]  %s8, 1024, %s374, [#allocation12], 64, 64, 4
        $region40: #{tpu_custom_call.1} parent=11 // pred_fallthru
          _
        // Predicated region
        $region41: #{tpu_custom_call.1} parent=11 // pred_check
          %p380 = pneg %p252
        $region42: #{tpu_custom_call.1} parent=11 // pred_check_branch
          %382 = sbr.rel (%p380) target = $region44
        $region43: #{tpu_custom_call.1} parent=11 // pred_region
          _
        $region44: #{tpu_custom_call.1} parent=11 // pred_fallthru
          _
      $region12: #{tpu_custom_call.1} parent=5 // pred_fallthru
        _
      %p383 = scmp.lt.s32.totalorder %s32, 2
      // Predicated region
      $region45: #{tpu_custom_call.1} parent=5 // pred_check
        %p384 = pneg %p383
      $region46: #{tpu_custom_call.1} parent=5 // pred_check_branch
        %386 = sbr.rel (%p384) target = $region48
      $region47: #{tpu_custom_call.1} parent=5 // pred_region
        // Predicated region
        $region49: #{tpu_custom_call.1} parent=47 // pred_check
          %p387 = pneg %p52
        $region50: #{tpu_custom_call.1} parent=47 // pred_check_branch
          %389 = sbr.rel (%p387) target = $region52
        $region51: #{tpu_custom_call.1} parent=47 // pred_region
          %s390 = sand.u32 %s42, 1
          %s391 = scalar_lea.sflag [#allocation3], %s390
          %s392 = sand.u32 %s42, 1
          %s393 = smul.addr %s392, 128
          %s394 = scalar_lea.vmem [#allocation2], %s393
          %s395 = smul.u32 16, %s32
          %s397 = ssub.s32 2048, 2048
          %398 = vsyncadd %s391, %s397
          %s399 = smul.addr %s395, 128
          %s400 = scalar_lea.hbm %s0, %s399
          %s401 = sshll.u32 %s394, 4
          %s402 = int_to_ptr.vmem [resolvable:$true] %s401
          %407 = dma.hbm_to_vmem [thread:$0]  %s400, 2048, %s402, %s391, 128, 128, 8
        $region52: #{tpu_custom_call.1} parent=47 // pred_fallthru
          _
        // Predicated region
        $region53: #{tpu_custom_call.1} parent=47 // pred_check
          %p408 = pneg %p78
        $region54: #{tpu_custom_call.1} parent=47 // pred_check_branch
          %410 = sbr.rel (%p408) target = $region56
        $region55: #{tpu_custom_call.1} parent=47 // pred_region
          %s411 = sand.u32 %s32, 1
          %s412 = scalar_lea.sflag [#allocation6], %s411
          %s413 = sand.u32 %s68, 1
          %s414 = smul.addr %s413, 128
          %s415 = scalar_lea.vmem [#allocation5], %s414
          %s416 = smul.u32 16, %s32
          %s418 = ssub.s32 2048, 2048
          %419 = vsyncadd %s412, %s418
          %s420 = smul.addr %s416, 128
          %s421 = scalar_lea.hbm %s1, %s420
          %s422 = sshll.u32 %s415, 4
          %s423 = int_to_ptr.vmem [resolvable:$true] %s422
          %428 = dma.hbm_to_vmem [thread:$0]  %s421, 2048, %s423, %s412, 128, 128, 8
        $region56: #{tpu_custom_call.1} parent=47 // pred_fallthru
          _
      $region48: #{tpu_custom_call.1} parent=5 // pred_fallthru
        _
      %p429 = scmp.le.s32.totalorder 1, %s32
      %p430 = scmp.lt.s32.totalorder %s32, 3
      %p431 = pnand %p429, %p430
      %p432 = pneg %p431
      // Predicated region
      $region57: #{tpu_custom_call.1} parent=5 // pred_check
        _
      $region58: #{tpu_custom_call.1} parent=5 // pred_check_branch
        %434 = sbr.rel (%p431) target = $region60
      $region59: #{tpu_custom_call.1} parent=5 // pred_region
        %s435 = ssub.s32 %s32, 1
        %s436 = sand.u32 %s45, 1
        %s437 = scalar_lea.sflag [#allocation3], %s436
        %s438 = sand.u32 %s45, 1
        %s439 = smul.addr %s438, 128
        %s440 = scalar_lea.vmem [#allocation2], %s439
        // Predicated region
        $region61: #{tpu_custom_call.1} parent=59 // pred_check
          %p441 = pneg %p58
        $region62: #{tpu_custom_call.1} parent=59 // pred_check_branch
          %443 = sbr.rel (%p441) target = $region64
        $region63: #{tpu_custom_call.1} parent=59 // pred_region
          %444 = dma.done %s437, 2048
        $region64: #{tpu_custom_call.1} parent=59 // pred_fallthru
          _
        %s445 = sand.u32 %s37, 1
        %s446 = scalar_lea.sflag [#allocation6], %s445
        %s447 = sand.u32 %s71, 1
        %s448 = smul.addr %s447, 128
        %s449 = scalar_lea.vmem [#allocation5], %s448
        // Predicated region
        $region65: #{tpu_custom_call.1} parent=59 // pred_check
          %p450 = pneg %p84
        $region66: #{tpu_custom_call.1} parent=59 // pred_check_branch
          %452 = sbr.rel (%p450) target = $region68
        $region67: #{tpu_custom_call.1} parent=59 // pred_region
          %453 = dma.done %s446, 2048
        $region68: #{tpu_custom_call.1} parent=59 // pred_fallthru
          _
        // Predicated region
        $region69: #{tpu_custom_call.1} parent=59 // pred_check
          %p454 = pneg %p105
        $region70: #{tpu_custom_call.1} parent=59 // pred_check_branch
          %456 = sbr.rel (%p454) target = $region72
        $region71: #{tpu_custom_call.1} parent=59 // pred_region
          %457 = dma.done [#allocation6], 1024
        $region72: #{tpu_custom_call.1} parent=59 // pred_fallthru
          _
        // Predicated region
        $region73: #{tpu_custom_call.1} parent=59 // pred_check
          %p458 = pneg %p147
        $region74: #{tpu_custom_call.1} parent=59 // pred_check_branch
          %460 = sbr.rel (%p458) target = $region76
        $region75: #{tpu_custom_call.1} parent=59 // pred_region
          %461 = dma.done [#allocation9], 2048
        $region76: #{tpu_custom_call.1} parent=59 // pred_fallthru
          _
        // Predicated region
        $region77: #{tpu_custom_call.1} parent=59 // pred_check
          %p462 = pneg %p189
        $region78: #{tpu_custom_call.1} parent=59 // pred_check_branch
          %464 = sbr.rel (%p462) target = $region80
        $region79: #{tpu_custom_call.1} parent=59 // pred_region
          %465 = dma.done [#allocation9], 1024
        $region80: #{tpu_custom_call.1} parent=59 // pred_fallthru
          _
        // Predicated region
        $region81: #{tpu_custom_call.1} parent=59 // pred_check
          %p466 = pneg %p231
        $region82: #{tpu_custom_call.1} parent=59 // pred_check_branch
          %468 = sbr.rel (%p466) target = $region84
        $region83: #{tpu_custom_call.1} parent=59 // pred_region
          %469 = dma.done [#allocation12], 1024
        $region84: #{tpu_custom_call.1} parent=59 // pred_fallthru
          _
        %s470 = sand.u32 %s45, 1
        %s471 = scalar_lea.sflag [#allocation3], %s470
        %s472 = sand.u32 %s45, 1
        %s473 = smul.addr %s472, 128
        %s474 = scalar_lea.vmem [#allocation2], %s473
        %p475 = pneg %p58
        %p476 = pneg %p55
        %s477 = sand.u32 %s37, 1
        %s478 = scalar_lea.sflag [#allocation6], %s477
        %s479 = sand.u32 %s71, 1
        %s480 = smul.addr %s479, 128
        %s481 = scalar_lea.vmem [#allocation5], %s480
        %p482 = pneg %p84
        %p483 = pneg %p81
        %p484 = pneg %p105
        %p485 = pneg %p102
        %p486 = pneg %p126
        %p487 = pneg %p123
        %p488 = pneg %p147
        %p489 = pneg %p144
        %p490 = pneg %p168
        %p491 = pneg %p165
        %p492 = pneg %p189
        %p493 = pneg %p186
        %p494 = pneg %p210
        %p495 = pneg %p207
        %p496 = pneg %p231
        %p497 = pneg %p228
        %p498 = pneg %p252
        %p499 = pneg %p249
        %p500 = pneg %p278
        %p501 = pneg %p275
        %s502 = sand.u32 %s265, 1
        %s503 = scalar_lea.sflag [#allocation4], %s502
        %s504 = sand.u32 %s265, 1
        %s505 = smul.addr %s504, 128
        %s506 = scalar_lea.vmem [#allocation13], %s505
        %p507 = pneg %p304
        %p508 = pneg %p301
        %s509 = sand.u32 %s291, 1
        %s510 = scalar_lea.sflag [#allocation15], %s509
        %s511 = sand.u32 %s291, 1
        %s512 = smul.addr %s511, 256
        %s513 = scalar_lea.vmem [#allocation14], %s512
        %s514 = smul.u32 16, %s37
        %s515 = smul.u32 16, %s37
        %s516 = smul.u32 16, %s37
        %s517 = smul.u32 16, %s37
        %v519 = vld [vmem:[%s440] sm:$0xff]
        %v520 = vld [vmem:[%s440 + $0x8] sm:$0xff]
        %v521 = vld [vmem:[%s440 + $0x10] sm:$0xff]
        %v522 = vld [vmem:[%s440 + $0x18] sm:$0xff]
        %v523 = vld [vmem:[%s440 + $0x20] sm:$0xff]
        %v524 = vld [vmem:[%s440 + $0x28] sm:$0xff]
        %v525 = vld [vmem:[%s440 + $0x30] sm:$0xff]
        %v526 = vld [vmem:[%s440 + $0x38] sm:$0xff]
        %v527 = vld [vmem:[%s440 + $0x40] sm:$0xff]
        %v528 = vld [vmem:[%s440 + $0x48] sm:$0xff]
        %v529 = vld [vmem:[%s440 + $0x50] sm:$0xff]
        %v530 = vld [vmem:[%s440 + $0x58] sm:$0xff]
        %v531 = vld [vmem:[%s440 + $0x60] sm:$0xff]
        %v532 = vld [vmem:[%s440 + $0x68] sm:$0xff]
        %v533 = vld [vmem:[%s440 + $0x70] sm:$0xff]
        %v534 = vld [vmem:[%s440 + $0x78] sm:$0xff]
        %v535 = vpack.c.bf16 %v520, %v519
        %v536 = vpack.c.bf16 %v522, %v521
        %v537 = vpack.c.bf16 %v524, %v523
        %v538 = vpack.c.bf16 %v526, %v525
        %v539 = vpack.c.bf16 %v528, %v527
        %v540 = vpack.c.bf16 %v530, %v529
        %v541 = vpack.c.bf16 %v532, %v531
        %v542 = vpack.c.bf16 %v534, %v533
        %v543 = vld [vmem:[#allocation7] sm:$0xf]
        %v544 = vld [vmem:[#allocation7 + $0x4] sm:$0xf]
        %v545 = vld [vmem:[#allocation7 + $0x8] sm:$0xf]
        %v546 = vld [vmem:[#allocation7 + $0xc] sm:$0xf]
        %v547 = vld [vmem:[#allocation7 + $0x10] sm:$0xf]
        %v548 = vld [vmem:[#allocation7 + $0x14] sm:$0xf]
        %v549 = vld [vmem:[#allocation7 + $0x18] sm:$0xf]
        %v550 = vld [vmem:[#allocation7 + $0x1c] sm:$0xf]
        %v551 = vld [vmem:[#allocation7 + $0x20] sm:$0xf]
        %v552 = vld [vmem:[#allocation7 + $0x24] sm:$0xf]
        %v553 = vld [vmem:[#allocation7 + $0x28] sm:$0xf]
        %v554 = vld [vmem:[#allocation7 + $0x2c] sm:$0xf]
        %v555 = vld [vmem:[#allocation7 + $0x30] sm:$0xf]
        %v556 = vld [vmem:[#allocation7 + $0x34] sm:$0xf]
        %v557 = vld [vmem:[#allocation7 + $0x38] sm:$0xf]
        %v558 = vld [vmem:[#allocation7 + $0x3c] sm:$0xf]
        %v559 = vld [vmem:[%s3] sm:$0x1]
        %v561 = vlaneseq
        %v562 = vshrl.u32 %v561, 7
        %v563 = vsub.s32 0, %v562
        %v564 = vrot.slane %v559, %v563
        %v582 = vunpack.c.l.b16 %v543
        %v583 = vunpack.c.l.b16 %v544
        %v584 = vunpack.c.l.b16 %v545
        %v585 = vunpack.c.l.b16 %v546
        %v586 = vunpack.c.l.b16 %v547
        %v587 = vunpack.c.l.b16 %v548
        %v588 = vunpack.c.l.b16 %v549
        %v589 = vunpack.c.l.b16 %v550
        %v590 = vunpack.c.l.b16 %v551
        %v591 = vunpack.c.l.b16 %v552
        %v592 = vunpack.c.l.b16 %v553
        %v593 = vunpack.c.l.b16 %v554
        %v594 = vunpack.c.l.b16 %v555
        %v595 = vunpack.c.l.b16 %v556
        %v596 = vunpack.c.l.b16 %v557
        %v597 = vunpack.c.l.b16 %v558
        %v598 = vpack.c.b16 %v583, %v582
        %v599 = vpack.c.b16 %v585, %v584
        %v600 = vpack.c.b16 %v587, %v586
        %v601 = vpack.c.b16 %v589, %v588
        %v602 = vpack.c.b16 %v591, %v590
        %v603 = vpack.c.b16 %v593, %v592
        %v604 = vpack.c.b16 %v595, %v594
        %v605 = vpack.c.b16 %v597, %v596
        %614 = vmatprep.subr.bf16.mxu0 0
        %615 = vmatpush1.bf16.msra.mxu0 %v605
        %616 = vmatprep.subr.bf16.mxu0 0
        %617 = vmatpush1.bf16.msra.mxu0 %v604
        %618 = vmatprep.subr.bf16.mxu0 0
        %619 = vmatpush1.bf16.msra.mxu0 %v603
        %620 = vmatprep.subr.bf16.mxu0 0
        %621 = vmatpush1.bf16.msra.mxu0 %v602
        %622 = vmatprep.subr.bf16.mxu0 0
        %623 = vmatpush1.bf16.msra.mxu0 %v601
        %624 = vmatprep.subr.bf16.mxu0 0
        %625 = vmatpush1.bf16.msra.mxu0 %v600
        %626 = vmatprep.subr.bf16.mxu0 0
        %627 = vmatpush1.bf16.msra.mxu0 %v599
        %628 = vmatprep.subr.bf16.mxu0 0
        %629 = vmatpush1.bf16.msra.mxu0 %v598
        %630 = vmatprep.subr.bf16.mxu0 0
        %631 = vmatpush2.bf16.msra.mxu0 0
        %632 = vmatprep.subr.bf16.mxu0 0
        %633 = vmatpush2.bf16.msra.mxu0 0
        %634 = vmatprep.subr.bf16.mxu0 0
        %635 = vmatpush2.bf16.msra.mxu0 0
        %636 = vmatprep.subr.bf16.mxu0 0
        %637 = vmatpush2.bf16.msra.mxu0 0
        %638 = vmatprep.subr.bf16.mxu0 0
        %639 = vmatpush2.bf16.msra.mxu0 0
        %640 = vmatprep.subr.bf16.mxu0 0
        %641 = vmatpush2.bf16.msra.mxu0 0
        %642 = vmatprep.subr.bf16.mxu0 0
        %643 = vmatpush2.bf16.msra.mxu0 0
        %644 = vmatprep.subr.bf16.mxu0 0
        %645 = vmatpush2.bf16.msra.mxu0 0
        %646 = vmatprep.mubr.bf16.mxu0 0
        %647 = vmatmul.mubr.bf16.gmra.mxu0 %v535
        %v648 = vpop.f32.mrf.mxu0
        %v649 = vadd.f32 %v564, %v648
        %v650 = vpop.f32.mrf.mxu0
        %v651 = vpop.f32.mrf.mxu0
        %v652 = vadd.f32 %v564, %v651
        %v653 = vpop.f32.mrf.mxu0
        %654 = vmatprep.mubr.bf16.mxu0 0
        %655 = vmatmul.mubr.bf16.gmra.mxu0 %v536
        %v656 = vpop.f32.mrf.mxu0
        %v657 = vadd.f32 %v564, %v656
        %v658 = vpop.f32.mrf.mxu0
        %v659 = vpop.f32.mrf.mxu0
        %v660 = vadd.f32 %v564, %v659
        %v661 = vpop.f32.mrf.mxu0
        %662 = vmatprep.mubr.bf16.mxu0 0
        %663 = vmatmul.mubr.bf16.gmra.mxu0 %v537
        %v664 = vpop.f32.mrf.mxu0
        %v665 = vadd.f32 %v564, %v664
        %v666 = vpop.f32.mrf.mxu0
        %v667 = vpop.f32.mrf.mxu0
        %v668 = vadd.f32 %v564, %v667
        %v669 = vpop.f32.mrf.mxu0
        %670 = vmatprep.mubr.bf16.mxu0 0
        %671 = vmatmul.mubr.bf16.gmra.mxu0 %v538
        %v672 = vpop.f32.mrf.mxu0
        %v673 = vadd.f32 %v564, %v672
        %v674 = vpop.f32.mrf.mxu0
        %v675 = vpop.f32.mrf.mxu0
        %v676 = vadd.f32 %v564, %v675
        %v677 = vpop.f32.mrf.mxu0
        %678 = vmatprep.mubr.bf16.mxu0 0
        %679 = vmatmul.mubr.bf16.gmra.mxu0 %v539
        %v680 = vpop.f32.mrf.mxu0
        %v681 = vadd.f32 %v564, %v680
        %v682 = vpop.f32.mrf.mxu0
        %v683 = vpop.f32.mrf.mxu0
        %v684 = vadd.f32 %v564, %v683
        %v685 = vpop.f32.mrf.mxu0
        %686 = vmatprep.mubr.bf16.mxu0 0
        %687 = vmatmul.mubr.bf16.gmra.mxu0 %v540
        %v688 = vpop.f32.mrf.mxu0
        %v689 = vadd.f32 %v564, %v688
        %v690 = vpop.f32.mrf.mxu0
        %v691 = vpop.f32.mrf.mxu0
        %v692 = vadd.f32 %v564, %v691
        %v693 = vpop.f32.mrf.mxu0
        %694 = vmatprep.mubr.bf16.mxu0 0
        %695 = vmatmul.mubr.bf16.gmra.mxu0 %v541
        %v696 = vpop.f32.mrf.mxu0
        %v697 = vadd.f32 %v564, %v696
        %v698 = vpop.f32.mrf.mxu0
        %v699 = vpop.f32.mrf.mxu0
        %v700 = vadd.f32 %v564, %v699
        %v701 = vpop.f32.mrf.mxu0
        %702 = vmatprep.mubr.bf16.mxu0 0
        %703 = vmatmul.mubr.bf16.gmra.mxu0 %v542
        %v704 = vpop.f32.mrf.mxu0
        %v705 = vadd.f32 %v564, %v704
        %v706 = vpop.f32.mrf.mxu0
        %v707 = vpop.f32.mrf.mxu0
        %v708 = vadd.f32 %v564, %v707
        %v709 = vpop.f32.mrf.mxu0
        %710 = vdwg.mxu0
        %v711 = vmax.f32 %v649, 0.0
        %v712 = vmax.f32 %v652, 0.0
        %v713 = vmax.f32 %v657, 0.0
        %v714 = vmax.f32 %v660, 0.0
        %v715 = vmax.f32 %v665, 0.0
        %v716 = vmax.f32 %v668, 0.0
        %v717 = vmax.f32 %v673, 0.0
        %v718 = vmax.f32 %v676, 0.0
        %v719 = vmax.f32 %v681, 0.0
        %v720 = vmax.f32 %v684, 0.0
        %v721 = vmax.f32 %v689, 0.0
        %v722 = vmax.f32 %v692, 0.0
        %v723 = vmax.f32 %v697, 0.0
        %v724 = vmax.f32 %v700, 0.0
        %v725 = vmax.f32 %v705, 0.0
        %v726 = vmax.f32 %v708, 0.0
        %v727 = vpack.c.bf16 %v712, %v711
        %v728 = vpack.c.bf16 %v714, %v713
        %v729 = vpack.c.bf16 %v716, %v715
        %v730 = vpack.c.bf16 %v718, %v717
        %v731 = vpack.c.bf16 %v720, %v719
        %v732 = vpack.c.bf16 %v722, %v721
        %v733 = vpack.c.bf16 %v724, %v723
        %v734 = vpack.c.bf16 %v726, %v725
        %v735 = vld [vmem:[#allocation8] sm:$0xff]
        %v736 = vld [vmem:[#allocation8 + $0x8] sm:$0xff]
        %v737 = vld [vmem:[#allocation8 + $0x10] sm:$0xff]
        %v738 = vld [vmem:[#allocation8 + $0x18] sm:$0xff]
        %v739 = vld [vmem:[#allocation8 + $0x20] sm:$0xff]
        %v740 = vld [vmem:[#allocation8 + $0x28] sm:$0xff]
        %v741 = vld [vmem:[#allocation8 + $0x30] sm:$0xff]
        %v742 = vld [vmem:[#allocation8 + $0x38] sm:$0xff]
        %v743 = vld [vmem:[#allocation8 + $0x40] sm:$0xff]
        %v744 = vld [vmem:[#allocation8 + $0x48] sm:$0xff]
        %v745 = vld [vmem:[#allocation8 + $0x50] sm:$0xff]
        %v746 = vld [vmem:[#allocation8 + $0x58] sm:$0xff]
        %v747 = vld [vmem:[#allocation8 + $0x60] sm:$0xff]
        %v748 = vld [vmem:[#allocation8 + $0x68] sm:$0xff]
        %v749 = vld [vmem:[#allocation8 + $0x70] sm:$0xff]
        %v750 = vld [vmem:[#allocation8 + $0x78] sm:$0xff]
        %v751 = vld [vmem:[%s5] sm:$0x3]
        %v753 = vlaneseq
        %v754 = vshrl.u32 %v753, 7
        %v755 = vsub.s32 0, %v754
        %v756 = vrot.slane %v751, %v755
        %v757 = vlaneseq
        %v758 = vshrl.u32 %v757, 7
        %v759 = vsub.s32 1, %v758
        %v760 = vrot.slane %v751, %v759
        %v779 = vunpack.c.l.b16 %v735
        %v780 = vunpack.c.h.b16 %v735
        %v781 = vunpack.c.l.b16 %v736
        %v782 = vunpack.c.h.b16 %v736
        %v783 = vunpack.c.l.b16 %v737
        %v784 = vunpack.c.h.b16 %v737
        %v785 = vunpack.c.l.b16 %v738
        %v786 = vunpack.c.h.b16 %v738
        %v787 = vunpack.c.l.b16 %v739
        %v788 = vunpack.c.h.b16 %v739
        %v789 = vunpack.c.l.b16 %v740
        %v790 = vunpack.c.h.b16 %v740
        %v791 = vunpack.c.l.b16 %v741
        %v792 = vunpack.c.h.b16 %v741
        %v793 = vunpack.c.l.b16 %v742
        %v794 = vunpack.c.h.b16 %v742
        %v795 = vunpack.c.l.b16 %v743
        %v796 = vunpack.c.h.b16 %v743
        %v797 = vunpack.c.l.b16 %v744
        %v798 = vunpack.c.h.b16 %v744
        %v799 = vunpack.c.l.b16 %v745
        %v800 = vunpack.c.h.b16 %v745
        %v801 = vunpack.c.l.b16 %v746
        %v802 = vunpack.c.h.b16 %v746
        %v803 = vunpack.c.l.b16 %v747
        %v804 = vunpack.c.h.b16 %v747
        %v805 = vunpack.c.l.b16 %v748
        %v806 = vunpack.c.h.b16 %v748
        %v807 = vunpack.c.l.b16 %v749
        %v808 = vunpack.c.h.b16 %v749
        %v809 = vunpack.c.l.b16 %v750
        %v810 = vunpack.c.h.b16 %v750
        %v811 = vpack.c.b16 %v781, %v779
        %v812 = vpack.c.b16 %v782, %v780
        %v813 = vpack.c.b16 %v785, %v783
        %v814 = vpack.c.b16 %v786, %v784
        %v815 = vpack.c.b16 %v789, %v787
        %v816 = vpack.c.b16 %v790, %v788
        %v817 = vpack.c.b16 %v793, %v791
        %v818 = vpack.c.b16 %v794, %v792
        %v819 = vpack.c.b16 %v797, %v795
        %v820 = vpack.c.b16 %v798, %v796
        %v821 = vpack.c.b16 %v801, %v799
        %v822 = vpack.c.b16 %v802, %v800
        %v823 = vpack.c.b16 %v805, %v803
        %v824 = vpack.c.b16 %v806, %v804
        %v825 = vpack.c.b16 %v809, %v807
        %v826 = vpack.c.b16 %v810, %v808
        %843 = vmatprep.subr.bf16.mxu0 %v826
        %844 = vmatpush1.bf16.msra.mxu0 %v825
        %845 = vmatprep.subr.bf16.mxu0 %v824
        %846 = vmatpush1.bf16.msra.mxu0 %v823
        %847 = vmatprep.subr.bf16.mxu0 %v822
        %848 = vmatpush1.bf16.msra.mxu0 %v821
        %849 = vmatprep.subr.bf16.mxu0 %v820
        %850 = vmatpush1.bf16.msra.mxu0 %v819
        %851 = vmatprep.subr.bf16.mxu0 %v818
        %852 = vmatpush1.bf16.msra.mxu0 %v817
        %853 = vmatprep.subr.bf16.mxu0 %v816
        %854 = vmatpush1.bf16.msra.mxu0 %v815
        %855 = vmatprep.subr.bf16.mxu0 %v814
        %856 = vmatpush1.bf16.msra.mxu0 %v813
        %857 = vmatprep.subr.bf16.mxu0 %v812
        %858 = vmatpush1.bf16.msra.mxu0 %v811
        %859 = vmatprep.subr.bf16.mxu0 0
        %860 = vmatpush2.bf16.msra.mxu0 0
        %861 = vmatprep.subr.bf16.mxu0 0
        %862 = vmatpush2.bf16.msra.mxu0 0
        %863 = vmatprep.subr.bf16.mxu0 0
        %864 = vmatpush2.bf16.msra.mxu0 0
        %865 = vmatprep.subr.bf16.mxu0 0
        %866 = vmatpush2.bf16.msra.mxu0 0
        %867 = vmatprep.subr.bf16.mxu0 0
        %868 = vmatpush2.bf16.msra.mxu0 0
        %869 = vmatprep.subr.bf16.mxu0 0
        %870 = vmatpush2.bf16.msra.mxu0 0
        %871 = vmatprep.subr.bf16.mxu0 0
        %872 = vmatpush2.bf16.msra.mxu0 0
        %873 = vmatprep.subr.bf16.mxu0 0
        %874 = vmatpush2.bf16.msra.mxu0 0
        %875 = vmatprep.mubr.bf16.mxu0 0
        %876 = vmatmul.mubr.bf16.gmra.mxu0 %v727
        %v877 = vpop.f32.mrf.mxu0
        %v878 = vadd.f32 %v756, %v877
        %v879 = vpop.f32.mrf.mxu0
        %v880 = vadd.f32 %v760, %v879
        %v881 = vpop.f32.mrf.mxu0
        %v882 = vadd.f32 %v756, %v881
        %v883 = vpop.f32.mrf.mxu0
        %v884 = vadd.f32 %v760, %v883
        %885 = vmatprep.mubr.bf16.mxu0 0
        %886 = vmatmul.mubr.bf16.gmra.mxu0 %v728
        %v887 = vpop.f32.mrf.mxu0
        %v888 = vadd.f32 %v756, %v887
        %v889 = vpop.f32.mrf.mxu0
        %v890 = vadd.f32 %v760, %v889
        %v891 = vpop.f32.mrf.mxu0
        %v892 = vadd.f32 %v756, %v891
        %v893 = vpop.f32.mrf.mxu0
        %v894 = vadd.f32 %v760, %v893
        %895 = vmatprep.mubr.bf16.mxu0 0
        %896 = vmatmul.mubr.bf16.gmra.mxu0 %v729
        %v897 = vpop.f32.mrf.mxu0
        %v898 = vadd.f32 %v756, %v897
        %v899 = vpop.f32.mrf.mxu0
        %v900 = vadd.f32 %v760, %v899
        %v901 = vpop.f32.mrf.mxu0
        %v902 = vadd.f32 %v756, %v901
        %v903 = vpop.f32.mrf.mxu0
        %v904 = vadd.f32 %v760, %v903
        %905 = vmatprep.mubr.bf16.mxu0 0
        %906 = vmatmul.mubr.bf16.gmra.mxu0 %v730
        %v907 = vpop.f32.mrf.mxu0
        %v908 = vadd.f32 %v756, %v907
        %v909 = vpop.f32.mrf.mxu0
        %v910 = vadd.f32 %v760, %v909
        %v911 = vpop.f32.mrf.mxu0
        %v912 = vadd.f32 %v756, %v911
        %v913 = vpop.f32.mrf.mxu0
        %v914 = vadd.f32 %v760, %v913
        %915 = vmatprep.mubr.bf16.mxu0 0
        %916 = vmatmul.mubr.bf16.gmra.mxu0 %v731
        %v917 = vpop.f32.mrf.mxu0
        %v918 = vadd.f32 %v756, %v917
        %v919 = vpop.f32.mrf.mxu0
        %v920 = vadd.f32 %v760, %v919
        %v921 = vpop.f32.mrf.mxu0
        %v922 = vadd.f32 %v756, %v921
        %v923 = vpop.f32.mrf.mxu0
        %v924 = vadd.f32 %v760, %v923
        %925 = vmatprep.mubr.bf16.mxu0 0
        %926 = vmatmul.mubr.bf16.gmra.mxu0 %v732
        %v927 = vpop.f32.mrf.mxu0
        %v928 = vadd.f32 %v756, %v927
        %v929 = vpop.f32.mrf.mxu0
        %v930 = vadd.f32 %v760, %v929
        %v931 = vpop.f32.mrf.mxu0
        %v932 = vadd.f32 %v756, %v931
        %v933 = vpop.f32.mrf.mxu0
        %v934 = vadd.f32 %v760, %v933
        %935 = vmatprep.mubr.bf16.mxu0 0
        %936 = vmatmul.mubr.bf16.gmra.mxu0 %v733
        %v937 = vpop.f32.mrf.mxu0
        %v938 = vadd.f32 %v756, %v937
        %v939 = vpop.f32.mrf.mxu0
        %v940 = vadd.f32 %v760, %v939
        %v941 = vpop.f32.mrf.mxu0
        %v942 = vadd.f32 %v756, %v941
        %v943 = vpop.f32.mrf.mxu0
        %v944 = vadd.f32 %v760, %v943
        %945 = vmatprep.mubr.bf16.mxu0 0
        %946 = vmatmul.mubr.bf16.gmra.mxu0 %v734
        %v947 = vpop.f32.mrf.mxu0
        %v948 = vadd.f32 %v756, %v947
        %v949 = vpop.f32.mrf.mxu0
        %v950 = vadd.f32 %v760, %v949
        %v951 = vpop.f32.mrf.mxu0
        %v952 = vadd.f32 %v756, %v951
        %v953 = vpop.f32.mrf.mxu0
        %v954 = vadd.f32 %v760, %v953
        %955 = vdwg.mxu0
        %956 = vst [vmem:[%s513] sm:$0xff] %v878
        %957 = vst [vmem:[%s513 + $0x8] sm:$0xff] %v880
        %958 = vst [vmem:[%s513 + $0x10] sm:$0xff] %v882
        %959 = vst [vmem:[%s513 + $0x18] sm:$0xff] %v884
        %960 = vst [vmem:[%s513 + $0x20] sm:$0xff] %v888
        %961 = vst [vmem:[%s513 + $0x28] sm:$0xff] %v890
        %962 = vst [vmem:[%s513 + $0x30] sm:$0xff] %v892
        %963 = vst [vmem:[%s513 + $0x38] sm:$0xff] %v894
        %964 = vst [vmem:[%s513 + $0x40] sm:$0xff] %v898
        %965 = vst [vmem:[%s513 + $0x48] sm:$0xff] %v900
        %966 = vst [vmem:[%s513 + $0x50] sm:$0xff] %v902
        %967 = vst [vmem:[%s513 + $0x58] sm:$0xff] %v904
        %968 = vst [vmem:[%s513 + $0x60] sm:$0xff] %v908
        %969 = vst [vmem:[%s513 + $0x68] sm:$0xff] %v910
        %970 = vst [vmem:[%s513 + $0x70] sm:$0xff] %v912
        %971 = vst [vmem:[%s513 + $0x78] sm:$0xff] %v914
        %972 = vst [vmem:[%s513 + $0x80] sm:$0xff] %v918
        %973 = vst [vmem:[%s513 + $0x88] sm:$0xff] %v920
        %974 = vst [vmem:[%s513 + $0x90] sm:$0xff] %v922
        %975 = vst [vmem:[%s513 + $0x98] sm:$0xff] %v924
        %976 = vst [vmem:[%s513 + $0xa0] sm:$0xff] %v928
        %977 = vst [vmem:[%s513 + $0xa8] sm:$0xff] %v930
        %978 = vst [vmem:[%s513 + $0xb0] sm:$0xff] %v932
        %979 = vst [vmem:[%s513 + $0xb8] sm:$0xff] %v934
        %980 = vst [vmem:[%s513 + $0xc0] sm:$0xff] %v938
        %981 = vst [vmem:[%s513 + $0xc8] sm:$0xff] %v940
        %982 = vst [vmem:[%s513 + $0xd0] sm:$0xff] %v942
        %983 = vst [vmem:[%s513 + $0xd8] sm:$0xff] %v944
        %984 = vst [vmem:[%s513 + $0xe0] sm:$0xff] %v948
        %985 = vst [vmem:[%s513 + $0xe8] sm:$0xff] %v950
        %986 = vst [vmem:[%s513 + $0xf0] sm:$0xff] %v952
        %987 = vst [vmem:[%s513 + $0xf8] sm:$0xff] %v954
        %v988 = vmul.f32 %v880, 0.5
        %v989 = vmul.f32 %v884, 0.5
        %v990 = vmul.f32 %v890, 0.5
        %v991 = vmul.f32 %v894, 0.5
        %v992 = vmul.f32 %v900, 0.5
        %v993 = vmul.f32 %v904, 0.5
        %v994 = vmul.f32 %v910, 0.5
        %v995 = vmul.f32 %v914, 0.5
        %v996 = vmul.f32 %v920, 0.5
        %v997 = vmul.f32 %v924, 0.5
        %v998 = vmul.f32 %v930, 0.5
        %v999 = vmul.f32 %v934, 0.5
        %v1000 = vmul.f32 %v940, 0.5
        %v1001 = vmul.f32 %v944, 0.5
        %v1002 = vmul.f32 %v950, 0.5
        %v1003 = vmul.f32 %v954, 0.5
        %v1004 = vmul.f32 %v988, 1.442695
        %v1005 = vpow.pop %v1004
        %v1006 = vmul.f32 %v989, 1.442695
        %v1007 = vpow.pop %v1006
        %v1008 = vmul.f32 %v990, 1.442695
        %v1009 = vpow.pop %v1008
        %v1010 = vmul.f32 %v991, 1.442695
        %v1011 = vpow.pop %v1010
        %v1012 = vmul.f32 %v992, 1.442695
        %v1013 = vpow.pop %v1012
        %v1014 = vmul.f32 %v993, 1.442695
        %v1015 = vpow.pop %v1014
        %v1016 = vmul.f32 %v994, 1.442695
        %v1017 = vpow.pop %v1016
        %v1018 = vmul.f32 %v995, 1.442695
        %v1019 = vpow.pop %v1018
        %v1020 = vmul.f32 %v996, 1.442695
        %v1021 = vpow.pop %v1020
        %v1022 = vmul.f32 %v997, 1.442695
        %v1023 = vpow.pop %v1022
        %v1024 = vmul.f32 %v998, 1.442695
        %v1025 = vpow.pop %v1024
        %v1026 = vmul.f32 %v999, 1.442695
        %v1027 = vpow.pop %v1026
        %v1028 = vmul.f32 %v1000, 1.442695
        %v1029 = vpow.pop %v1028
        %v1030 = vmul.f32 %v1001, 1.442695
        %v1031 = vpow.pop %v1030
        %v1032 = vmul.f32 %v1002, 1.442695
        %v1033 = vpow.pop %v1032
        %v1034 = vmul.f32 %v1003, 1.442695
        %v1035 = vpow.pop %v1034
        %v1036 = vld [vmem:[%s449] sm:$0xff]
        %v1037 = vld [vmem:[%s449 + $0x8] sm:$0xff]
        %v1038 = vld [vmem:[%s449 + $0x10] sm:$0xff]
        %v1039 = vld [vmem:[%s449 + $0x18] sm:$0xff]
        %v1040 = vld [vmem:[%s449 + $0x20] sm:$0xff]
        %v1041 = vld [vmem:[%s449 + $0x28] sm:$0xff]
        %v1042 = vld [vmem:[%s449 + $0x30] sm:$0xff]
        %v1043 = vld [vmem:[%s449 + $0x38] sm:$0xff]
        %v1044 = vld [vmem:[%s449 + $0x40] sm:$0xff]
        %v1045 = vld [vmem:[%s449 + $0x48] sm:$0xff]
        %v1046 = vld [vmem:[%s449 + $0x50] sm:$0xff]
        %v1047 = vld [vmem:[%s449 + $0x58] sm:$0xff]
        %v1048 = vld [vmem:[%s449 + $0x60] sm:$0xff]
        %v1049 = vld [vmem:[%s449 + $0x68] sm:$0xff]
        %v1050 = vld [vmem:[%s449 + $0x70] sm:$0xff]
        %v1051 = vld [vmem:[%s449 + $0x78] sm:$0xff]
        %v1052 = vmul.f32 %v1036, %v1005
        %v1053 = vmul.f32 %v1037, %v1007
        %v1054 = vmul.f32 %v1038, %v1009
        %v1055 = vmul.f32 %v1039, %v1011
        %v1056 = vmul.f32 %v1040, %v1013
        %v1057 = vmul.f32 %v1041, %v1015
        %v1058 = vmul.f32 %v1042, %v1017
        %v1059 = vmul.f32 %v1043, %v1019
        %v1060 = vmul.f32 %v1044, %v1021
        %v1061 = vmul.f32 %v1045, %v1023
        %v1062 = vmul.f32 %v1046, %v1025
        %v1063 = vmul.f32 %v1047, %v1027
        %v1064 = vmul.f32 %v1048, %v1029
        %v1065 = vmul.f32 %v1049, %v1031
        %v1066 = vmul.f32 %v1050, %v1033
        %v1067 = vmul.f32 %v1051, %v1035
        %v1068 = vadd.f32 %v878, %v1052
        %v1069 = vadd.f32 %v882, %v1053
        %v1070 = vadd.f32 %v888, %v1054
        %v1071 = vadd.f32 %v892, %v1055
        %v1072 = vadd.f32 %v898, %v1056
        %v1073 = vadd.f32 %v902, %v1057
        %v1074 = vadd.f32 %v908, %v1058
        %v1075 = vadd.f32 %v912, %v1059
        %v1076 = vadd.f32 %v918, %v1060
        %v1077 = vadd.f32 %v922, %v1061
        %v1078 = vadd.f32 %v928, %v1062
        %v1079 = vadd.f32 %v932, %v1063
        %v1080 = vadd.f32 %v938, %v1064
        %v1081 = vadd.f32 %v942, %v1065
        %v1082 = vadd.f32 %v948, %v1066
        %v1083 = vadd.f32 %v952, %v1067
        %v1084 = vpack.c.bf16 %v1069, %v1068
        %v1085 = vpack.c.bf16 %v1071, %v1070
        %v1086 = vpack.c.bf16 %v1073, %v1072
        %v1087 = vpack.c.bf16 %v1075, %v1074
        %v1088 = vpack.c.bf16 %v1077, %v1076
        %v1089 = vpack.c.bf16 %v1079, %v1078
        %v1090 = vpack.c.bf16 %v1081, %v1080
        %v1091 = vpack.c.bf16 %v1083, %v1082
        %v1092 = vld [vmem:[#allocation10] sm:$0xf]
        %v1093 = vld [vmem:[#allocation10 + $0x4] sm:$0xf]
        %v1094 = vld [vmem:[#allocation10 + $0x8] sm:$0xf]
        %v1095 = vld [vmem:[#allocation10 + $0xc] sm:$0xf]
        %v1096 = vld [vmem:[#allocation10 + $0x10] sm:$0xf]
        %v1097 = vld [vmem:[#allocation10 + $0x14] sm:$0xf]
        %v1098 = vld [vmem:[#allocation10 + $0x18] sm:$0xf]
        %v1099 = vld [vmem:[#allocation10 + $0x1c] sm:$0xf]
        %v1100 = vld [vmem:[#allocation10 + $0x20] sm:$0xf]
        %v1101 = vld [vmem:[#allocation10 + $0x24] sm:$0xf]
        %v1102 = vld [vmem:[#allocation10 + $0x28] sm:$0xf]
        %v1103 = vld [vmem:[#allocation10 + $0x2c] sm:$0xf]
        %v1104 = vld [vmem:[#allocation10 + $0x30] sm:$0xf]
        %v1105 = vld [vmem:[#allocation10 + $0x34] sm:$0xf]
        %v1106 = vld [vmem:[#allocation10 + $0x38] sm:$0xf]
        %v1107 = vld [vmem:[#allocation10 + $0x3c] sm:$0xf]
        %v1108 = vld [vmem:[%s7] sm:$0x1]
        %v1110 = vlaneseq
        %v1111 = vshrl.u32 %v1110, 7
        %v1112 = vsub.s32 0, %v1111
        %v1113 = vrot.slane %v1108, %v1112
        %v1131 = vunpack.c.l.b16 %v1092
        %v1132 = vunpack.c.l.b16 %v1093
        %v1133 = vunpack.c.l.b16 %v1094
        %v1134 = vunpack.c.l.b16 %v1095
        %v1135 = vunpack.c.l.b16 %v1096
        %v1136 = vunpack.c.l.b16 %v1097
        %v1137 = vunpack.c.l.b16 %v1098
        %v1138 = vunpack.c.l.b16 %v1099
        %v1139 = vunpack.c.l.b16 %v1100
        %v1140 = vunpack.c.l.b16 %v1101
        %v1141 = vunpack.c.l.b16 %v1102
        %v1142 = vunpack.c.l.b16 %v1103
        %v1143 = vunpack.c.l.b16 %v1104
        %v1144 = vunpack.c.l.b16 %v1105
        %v1145 = vunpack.c.l.b16 %v1106
        %v1146 = vunpack.c.l.b16 %v1107
        %v1147 = vpack.c.b16 %v1132, %v1131
        %v1148 = vpack.c.b16 %v1134, %v1133
        %v1149 = vpack.c.b16 %v1136, %v1135
        %v1150 = vpack.c.b16 %v1138, %v1137
        %v1151 = vpack.c.b16 %v1140, %v1139
        %v1152 = vpack.c.b16 %v1142, %v1141
        %v1153 = vpack.c.b16 %v1144, %v1143
        %v1154 = vpack.c.b16 %v1146, %v1145
        %1163 = vmatprep.subr.bf16.mxu0 0
        %1164 = vmatpush1.bf16.msra.mxu0 %v1154
        %1165 = vmatprep.subr.bf16.mxu0 0
        %1166 = vmatpush1.bf16.msra.mxu0 %v1153
        %1167 = vmatprep.subr.bf16.mxu0 0
        %1168 = vmatpush1.bf16.msra.mxu0 %v1152
        %1169 = vmatprep.subr.bf16.mxu0 0
        %1170 = vmatpush1.bf16.msra.mxu0 %v1151
        %1171 = vmatprep.subr.bf16.mxu0 0
        %1172 = vmatpush1.bf16.msra.mxu0 %v1150
        %1173 = vmatprep.subr.bf16.mxu0 0
        %1174 = vmatpush1.bf16.msra.mxu0 %v1149
        %1175 = vmatprep.subr.bf16.mxu0 0
        %1176 = vmatpush1.bf16.msra.mxu0 %v1148
        %1177 = vmatprep.subr.bf16.mxu0 0
        %1178 = vmatpush1.bf16.msra.mxu0 %v1147
        %1179 = vmatprep.subr.bf16.mxu0 0
        %1180 = vmatpush2.bf16.msra.mxu0 0
        %1181 = vmatprep.subr.bf16.mxu0 0
        %1182 = vmatpush2.bf16.msra.mxu0 0
        %1183 = vmatprep.subr.bf16.mxu0 0
        %1184 = vmatpush2.bf16.msra.mxu0 0
        %1185 = vmatprep.subr.bf16.mxu0 0
        %1186 = vmatpush2.bf16.msra.mxu0 0
        %1187 = vmatprep.subr.bf16.mxu0 0
        %1188 = vmatpush2.bf16.msra.mxu0 0
        %1189 = vmatprep.subr.bf16.mxu0 0
        %1190 = vmatpush2.bf16.msra.mxu0 0
        %1191 = vmatprep.subr.bf16.mxu0 0
        %1192 = vmatpush2.bf16.msra.mxu0 0
        %1193 = vmatprep.subr.bf16.mxu0 0
        %1194 = vmatpush2.bf16.msra.mxu0 0
        %1195 = vmatprep.mubr.bf16.mxu0 0
        %1196 = vmatmul.mubr.bf16.gmra.mxu0 %v1084
        %v1197 = vpop.f32.mrf.mxu0
        %v1198 = vadd.f32 %v1113, %v1197
        %v1199 = vpop.f32.mrf.mxu0
        %v1200 = vpop.f32.mrf.mxu0
        %v1201 = vadd.f32 %v1113, %v1200
        %v1202 = vpop.f32.mrf.mxu0
        %1203 = vmatprep.mubr.bf16.mxu0 0
        %1204 = vmatmul.mubr.bf16.gmra.mxu0 %v1085
        %v1205 = vpop.f32.mrf.mxu0
        %v1206 = vadd.f32 %v1113, %v1205
        %v1207 = vpop.f32.mrf.mxu0
        %v1208 = vpop.f32.mrf.mxu0
        %v1209 = vadd.f32 %v1113, %v1208
        %v1210 = vpop.f32.mrf.mxu0
        %1211 = vmatprep.mubr.bf16.mxu0 0
        %1212 = vmatmul.mubr.bf16.gmra.mxu0 %v1086
        %v1213 = vpop.f32.mrf.mxu0
        %v1214 = vadd.f32 %v1113, %v1213
        %v1215 = vpop.f32.mrf.mxu0
        %v1216 = vpop.f32.mrf.mxu0
        %v1217 = vadd.f32 %v1113, %v1216
        %v1218 = vpop.f32.mrf.mxu0
        %1219 = vmatprep.mubr.bf16.mxu0 0
        %1220 = vmatmul.mubr.bf16.gmra.mxu0 %v1087
        %v1221 = vpop.f32.mrf.mxu0
        %v1222 = vadd.f32 %v1113, %v1221
        %v1223 = vpop.f32.mrf.mxu0
        %v1224 = vpop.f32.mrf.mxu0
        %v1225 = vadd.f32 %v1113, %v1224
        %v1226 = vpop.f32.mrf.mxu0
        %1227 = vmatprep.mubr.bf16.mxu0 0
        %1228 = vmatmul.mubr.bf16.gmra.mxu0 %v1088
        %v1229 = vpop.f32.mrf.mxu0
        %v1230 = vadd.f32 %v1113, %v1229
        %v1231 = vpop.f32.mrf.mxu0
        %v1232 = vpop.f32.mrf.mxu0
        %v1233 = vadd.f32 %v1113, %v1232
        %v1234 = vpop.f32.mrf.mxu0
        %1235 = vmatprep.mubr.bf16.mxu0 0
        %1236 = vmatmul.mubr.bf16.gmra.mxu0 %v1089
        %v1237 = vpop.f32.mrf.mxu0
        %v1238 = vadd.f32 %v1113, %v1237
        %v1239 = vpop.f32.mrf.mxu0
        %v1240 = vpop.f32.mrf.mxu0
        %v1241 = vadd.f32 %v1113, %v1240
        %v1242 = vpop.f32.mrf.mxu0
        %1243 = vmatprep.mubr.bf16.mxu0 0
        %1244 = vmatmul.mubr.bf16.gmra.mxu0 %v1090
        %v1245 = vpop.f32.mrf.mxu0
        %v1246 = vadd.f32 %v1113, %v1245
        %v1247 = vpop.f32.mrf.mxu0
        %v1248 = vpop.f32.mrf.mxu0
        %v1249 = vadd.f32 %v1113, %v1248
        %v1250 = vpop.f32.mrf.mxu0
        %1251 = vmatprep.mubr.bf16.mxu0 0
        %1252 = vmatmul.mubr.bf16.gmra.mxu0 %v1091
        %v1253 = vpop.f32.mrf.mxu0
        %v1254 = vadd.f32 %v1113, %v1253
        %v1255 = vpop.f32.mrf.mxu0
        %v1256 = vpop.f32.mrf.mxu0
        %v1257 = vadd.f32 %v1113, %v1256
        %v1258 = vpop.f32.mrf.mxu0
        %1259 = vdwg.mxu0
        %v1260 = vmax.f32 %v1198, 0.0
        %v1261 = vmax.f32 %v1201, 0.0
        %v1262 = vmax.f32 %v1206, 0.0
        %v1263 = vmax.f32 %v1209, 0.0
        %v1264 = vmax.f32 %v1214, 0.0
        %v1265 = vmax.f32 %v1217, 0.0
        %v1266 = vmax.f32 %v1222, 0.0
        %v1267 = vmax.f32 %v1225, 0.0
        %v1268 = vmax.f32 %v1230, 0.0
        %v1269 = vmax.f32 %v1233, 0.0
        %v1270 = vmax.f32 %v1238, 0.0
        %v1271 = vmax.f32 %v1241, 0.0
        %v1272 = vmax.f32 %v1246, 0.0
        %v1273 = vmax.f32 %v1249, 0.0
        %v1274 = vmax.f32 %v1254, 0.0
        %v1275 = vmax.f32 %v1257, 0.0
        %v1276 = vpack.c.bf16 %v1261, %v1260
        %v1277 = vpack.c.bf16 %v1263, %v1262
        %v1278 = vpack.c.bf16 %v1265, %v1264
        %v1279 = vpack.c.bf16 %v1267, %v1266
        %v1280 = vpack.c.bf16 %v1269, %v1268
        %v1281 = vpack.c.bf16 %v1271, %v1270
        %v1282 = vpack.c.bf16 %v1273, %v1272
        %v1283 = vpack.c.bf16 %v1275, %v1274
        %v1284 = vld [vmem:[#allocation11] sm:$0xf]
        %v1285 = vld [vmem:[#allocation11 + $0x4] sm:$0xf]
        %v1286 = vld [vmem:[#allocation11 + $0x8] sm:$0xf]
        %v1287 = vld [vmem:[#allocation11 + $0xc] sm:$0xf]
        %v1288 = vld [vmem:[#allocation11 + $0x10] sm:$0xf]
        %v1289 = vld [vmem:[#allocation11 + $0x14] sm:$0xf]
        %v1290 = vld [vmem:[#allocation11 + $0x18] sm:$0xf]
        %v1291 = vld [vmem:[#allocation11 + $0x1c] sm:$0xf]
        %v1292 = vld [vmem:[#allocation11 + $0x20] sm:$0xf]
        %v1293 = vld [vmem:[#allocation11 + $0x24] sm:$0xf]
        %v1294 = vld [vmem:[#allocation11 + $0x28] sm:$0xf]
        %v1295 = vld [vmem:[#allocation11 + $0x2c] sm:$0xf]
        %v1296 = vld [vmem:[#allocation11 + $0x30] sm:$0xf]
        %v1297 = vld [vmem:[#allocation11 + $0x34] sm:$0xf]
        %v1298 = vld [vmem:[#allocation11 + $0x38] sm:$0xf]
        %v1299 = vld [vmem:[#allocation11 + $0x3c] sm:$0xf]
        %v1300 = vld [vmem:[%s9] sm:$0x1]
        %v1302 = vlaneseq
        %v1303 = vshrl.u32 %v1302, 7
        %v1304 = vsub.s32 0, %v1303
        %v1305 = vrot.slane %v1300, %v1304
        %v1323 = vunpack.c.l.b16 %v1284
        %v1324 = vunpack.c.l.b16 %v1285
        %v1325 = vunpack.c.l.b16 %v1286
        %v1326 = vunpack.c.l.b16 %v1287
        %v1327 = vunpack.c.l.b16 %v1288
        %v1328 = vunpack.c.l.b16 %v1289
        %v1329 = vunpack.c.l.b16 %v1290
        %v1330 = vunpack.c.l.b16 %v1291
        %v1331 = vunpack.c.l.b16 %v1292
        %v1332 = vunpack.c.l.b16 %v1293
        %v1333 = vunpack.c.l.b16 %v1294
        %v1334 = vunpack.c.l.b16 %v1295
        %v1335 = vunpack.c.l.b16 %v1296
        %v1336 = vunpack.c.l.b16 %v1297
        %v1337 = vunpack.c.l.b16 %v1298
        %v1338 = vunpack.c.l.b16 %v1299
        %v1339 = vpack.c.b16 %v1324, %v1323
        %v1340 = vpack.c.b16 %v1326, %v1325
        %v1341 = vpack.c.b16 %v1328, %v1327
        %v1342 = vpack.c.b16 %v1330, %v1329
        %v1343 = vpack.c.b16 %v1332, %v1331
        %v1344 = vpack.c.b16 %v1334, %v1333
        %v1345 = vpack.c.b16 %v1336, %v1335
        %v1346 = vpack.c.b16 %v1338, %v1337
        %1355 = vmatprep.subr.bf16.mxu0 0
        %1356 = vmatpush1.bf16.msra.mxu0 %v1346
        %1357 = vmatprep.subr.bf16.mxu0 0
        %1358 = vmatpush1.bf16.msra.mxu0 %v1345
        %1359 = vmatprep.subr.bf16.mxu0 0
        %1360 = vmatpush1.bf16.msra.mxu0 %v1344
        %1361 = vmatprep.subr.bf16.mxu0 0
        %1362 = vmatpush1.bf16.msra.mxu0 %v1343
        %1363 = vmatprep.subr.bf16.mxu0 0
        %1364 = vmatpush1.bf16.msra.mxu0 %v1342
        %1365 = vmatprep.subr.bf16.mxu0 0
        %1366 = vmatpush1.bf16.msra.mxu0 %v1341
        %1367 = vmatprep.subr.bf16.mxu0 0
        %1368 = vmatpush1.bf16.msra.mxu0 %v1340
        %1369 = vmatprep.subr.bf16.mxu0 0
        %1370 = vmatpush1.bf16.msra.mxu0 %v1339
        %1371 = vmatprep.subr.bf16.mxu0 0
        %1372 = vmatpush2.bf16.msra.mxu0 0
        %1373 = vmatprep.subr.bf16.mxu0 0
        %1374 = vmatpush2.bf16.msra.mxu0 0
        %1375 = vmatprep.subr.bf16.mxu0 0
        %1376 = vmatpush2.bf16.msra.mxu0 0
        %1377 = vmatprep.subr.bf16.mxu0 0
        %1378 = vmatpush2.bf16.msra.mxu0 0
        %1379 = vmatprep.subr.bf16.mxu0 0
        %1380 = vmatpush2.bf16.msra.mxu0 0
        %1381 = vmatprep.subr.bf16.mxu0 0
        %1382 = vmatpush2.bf16.msra.mxu0 0
        %1383 = vmatprep.subr.bf16.mxu0 0
        %1384 = vmatpush2.bf16.msra.mxu0 0
        %1385 = vmatprep.subr.bf16.mxu0 0
        %1386 = vmatpush2.bf16.msra.mxu0 0
        %1387 = vmatprep.mubr.bf16.mxu0 0
        %1388 = vmatmul.mubr.bf16.gmra.mxu0 %v1276
        %v1389 = vpop.f32.mrf.mxu0
        %v1390 = vadd.f32 %v1305, %v1389
        %v1391 = vpop.f32.mrf.mxu0
        %v1392 = vpop.f32.mrf.mxu0
        %v1393 = vadd.f32 %v1305, %v1392
        %v1394 = vpop.f32.mrf.mxu0
        %1395 = vmatprep.mubr.bf16.mxu0 0
        %1396 = vmatmul.mubr.bf16.gmra.mxu0 %v1277
        %v1397 = vpop.f32.mrf.mxu0
        %v1398 = vadd.f32 %v1305, %v1397
        %v1399 = vpop.f32.mrf.mxu0
        %v1400 = vpop.f32.mrf.mxu0
        %v1401 = vadd.f32 %v1305, %v1400
        %v1402 = vpop.f32.mrf.mxu0
        %1403 = vmatprep.mubr.bf16.mxu0 0
        %1404 = vmatmul.mubr.bf16.gmra.mxu0 %v1278
        %v1405 = vpop.f32.mrf.mxu0
        %v1406 = vadd.f32 %v1305, %v1405
        %v1407 = vpop.f32.mrf.mxu0
        %v1408 = vpop.f32.mrf.mxu0
        %v1409 = vadd.f32 %v1305, %v1408
        %v1410 = vpop.f32.mrf.mxu0
        %1411 = vmatprep.mubr.bf16.mxu0 0
        %1412 = vmatmul.mubr.bf16.gmra.mxu0 %v1279
        %v1413 = vpop.f32.mrf.mxu0
        %v1414 = vadd.f32 %v1305, %v1413
        %v1415 = vpop.f32.mrf.mxu0
        %v1416 = vpop.f32.mrf.mxu0
        %v1417 = vadd.f32 %v1305, %v1416
        %v1418 = vpop.f32.mrf.mxu0
        %1419 = vmatprep.mubr.bf16.mxu0 0
        %1420 = vmatmul.mubr.bf16.gmra.mxu0 %v1280
        %v1421 = vpop.f32.mrf.mxu0
        %v1422 = vadd.f32 %v1305, %v1421
        %v1423 = vpop.f32.mrf.mxu0
        %v1424 = vpop.f32.mrf.mxu0
        %v1425 = vadd.f32 %v1305, %v1424
        %v1426 = vpop.f32.mrf.mxu0
        %1427 = vmatprep.mubr.bf16.mxu0 0
        %1428 = vmatmul.mubr.bf16.gmra.mxu0 %v1281
        %v1429 = vpop.f32.mrf.mxu0
        %v1430 = vadd.f32 %v1305, %v1429
        %v1431 = vpop.f32.mrf.mxu0
        %v1432 = vpop.f32.mrf.mxu0
        %v1433 = vadd.f32 %v1305, %v1432
        %v1434 = vpop.f32.mrf.mxu0
        %1435 = vmatprep.mubr.bf16.mxu0 0
        %1436 = vmatmul.mubr.bf16.gmra.mxu0 %v1282
        %v1437 = vpop.f32.mrf.mxu0
        %v1438 = vadd.f32 %v1305, %v1437
        %v1439 = vpop.f32.mrf.mxu0
        %v1440 = vpop.f32.mrf.mxu0
        %v1441 = vadd.f32 %v1305, %v1440
        %v1442 = vpop.f32.mrf.mxu0
        %1443 = vmatprep.mubr.bf16.mxu0 0
        %1444 = vmatmul.mubr.bf16.gmra.mxu0 %v1283
        %v1445 = vpop.f32.mrf.mxu0
        %v1446 = vadd.f32 %v1305, %v1445
        %v1447 = vpop.f32.mrf.mxu0
        %v1448 = vpop.f32.mrf.mxu0
        %v1449 = vadd.f32 %v1305, %v1448
        %v1450 = vpop.f32.mrf.mxu0
        %1451 = vdwg.mxu0
        %v1452 = vsub.f32 0.0, %v1390
        %v1453 = vsub.f32 0.0, %v1393
        %v1454 = vsub.f32 0.0, %v1398
        %v1455 = vsub.f32 0.0, %v1401
        %v1456 = vsub.f32 0.0, %v1406
        %v1457 = vsub.f32 0.0, %v1409
        %v1458 = vsub.f32 0.0, %v1414
        %v1459 = vsub.f32 0.0, %v1417
        %v1460 = vsub.f32 0.0, %v1422
        %v1461 = vsub.f32 0.0, %v1425
        %v1462 = vsub.f32 0.0, %v1430
        %v1463 = vsub.f32 0.0, %v1433
        %v1464 = vsub.f32 0.0, %v1438
        %v1465 = vsub.f32 0.0, %v1441
        %v1466 = vsub.f32 0.0, %v1446
        %v1467 = vsub.f32 0.0, %v1449
        %v1468 = vmul.f32 %v1452, 1.442695
        %v1469 = vpow.pop %v1468
        %v1470 = vmul.f32 %v1453, 1.442695
        %v1471 = vpow.pop %v1470
        %v1472 = vmul.f32 %v1454, 1.442695
        %v1473 = vpow.pop %v1472
        %v1474 = vmul.f32 %v1455, 1.442695
        %v1475 = vpow.pop %v1474
        %v1476 = vmul.f32 %v1456, 1.442695
        %v1477 = vpow.pop %v1476
        %v1478 = vmul.f32 %v1457, 1.442695
        %v1479 = vpow.pop %v1478
        %v1480 = vmul.f32 %v1458, 1.442695
        %v1481 = vpow.pop %v1480
        %v1482 = vmul.f32 %v1459, 1.442695
        %v1483 = vpow.pop %v1482
        %v1484 = vmul.f32 %v1460, 1.442695
        %v1485 = vpow.pop %v1484
        %v1486 = vmul.f32 %v1461, 1.442695
        %v1487 = vpow.pop %v1486
        %v1488 = vmul.f32 %v1462, 1.442695
        %v1489 = vpow.pop %v1488
        %v1490 = vmul.f32 %v1463, 1.442695
        %v1491 = vpow.pop %v1490
        %v1492 = vmul.f32 %v1464, 1.442695
        %v1493 = vpow.pop %v1492
        %v1494 = vmul.f32 %v1465, 1.442695
        %v1495 = vpow.pop %v1494
        %v1496 = vmul.f32 %v1466, 1.442695
        %v1497 = vpow.pop %v1496
        %v1498 = vmul.f32 %v1467, 1.442695
        %v1499 = vpow.pop %v1498
        %v1500 = vadd.f32 %v1469, 1.0
        %v1501 = vadd.f32 %v1471, 1.0
        %v1502 = vadd.f32 %v1473, 1.0
        %v1503 = vadd.f32 %v1475, 1.0
        %v1504 = vadd.f32 %v1477, 1.0
        %v1505 = vadd.f32 %v1479, 1.0
        %v1506 = vadd.f32 %v1481, 1.0
        %v1507 = vadd.f32 %v1483, 1.0
        %v1508 = vadd.f32 %v1485, 1.0
        %v1509 = vadd.f32 %v1487, 1.0
        %v1510 = vadd.f32 %v1489, 1.0
        %v1511 = vadd.f32 %v1491, 1.0
        %v1512 = vadd.f32 %v1493, 1.0
        %v1513 = vadd.f32 %v1495, 1.0
        %v1514 = vadd.f32 %v1497, 1.0
        %v1515 = vadd.f32 %v1499, 1.0
        %v1516 = vrcp.pop %v1500
        %v1517 = vrcp.pop %v1501
        %v1518 = vrcp.pop %v1502
        %v1519 = vrcp.pop %v1503
        %v1520 = vrcp.pop %v1504
        %v1521 = vrcp.pop %v1505
        %v1522 = vrcp.pop %v1506
        %v1523 = vrcp.pop %v1507
        %v1524 = vrcp.pop %v1508
        %v1525 = vrcp.pop %v1509
        %v1526 = vrcp.pop %v1510
        %v1527 = vrcp.pop %v1511
        %v1528 = vrcp.pop %v1512
        %v1529 = vrcp.pop %v1513
        %v1530 = vrcp.pop %v1514
        %v1531 = vrcp.pop %v1515
        %1532 = vst [vmem:[%s506] sm:$0xff] %v1516
        %1533 = vst [vmem:[%s506 + $0x8] sm:$0xff] %v1517
        %1534 = vst [vmem:[%s506 + $0x10] sm:$0xff] %v1518
        %1535 = vst [vmem:[%s506 + $0x18] sm:$0xff] %v1519
        %1536 = vst [vmem:[%s506 + $0x20] sm:$0xff] %v1520
        %1537 = vst [vmem:[%s506 + $0x28] sm:$0xff] %v1521
        %1538 = vst [vmem:[%s506 + $0x30] sm:$0xff] %v1522
        %1539 = vst [vmem:[%s506 + $0x38] sm:$0xff] %v1523
        %1540 = vst [vmem:[%s506 + $0x40] sm:$0xff] %v1524
        %1541 = vst [vmem:[%s506 + $0x48] sm:$0xff] %v1525
        %1542 = vst [vmem:[%s506 + $0x50] sm:$0xff] %v1526
        %1543 = vst [vmem:[%s506 + $0x58] sm:$0xff] %v1527
        %1544 = vst [vmem:[%s506 + $0x60] sm:$0xff] %v1528
        %1545 = vst [vmem:[%s506 + $0x68] sm:$0xff] %v1529
        %1546 = vst [vmem:[%s506 + $0x70] sm:$0xff] %v1530
        %1547 = vst [vmem:[%s506 + $0x78] sm:$0xff] %v1531
        %s1548 = sand.u32 %s265, 1
        %s1549 = scalar_lea.sflag [#allocation4], %s1548
        %s1550 = sand.u32 %s265, 1
        %s1551 = smul.addr %s1550, 128
        %s1552 = scalar_lea.vmem [#allocation13], %s1551
        %s1553 = sand.u32 %s291, 1
        %s1554 = scalar_lea.sflag [#allocation15], %s1553
        %s1555 = sand.u32 %s291, 1
        %s1556 = smul.addr %s1555, 256
        %s1557 = scalar_lea.vmem [#allocation14], %s1556
        // Predicated region
        $region85: #{tpu_custom_call.1} parent=59 // pred_check
          %p1558 = pneg %p275
        $region86: #{tpu_custom_call.1} parent=59 // pred_check_branch
          %1560 = sbr.rel (%p1558) target = $region88
        $region87: #{tpu_custom_call.1} parent=59 // pred_region
          %s1561 = smul.u32 16, %s37
          %s1563 = ssub.s32 2048, 2048
          %1564 = vsyncadd %s1549, %s1563
          %s1565 = smul.addr %s1561, 128
          %s1566 = scalar_lea.hbm %s10, %s1565
          %s1567 = sshll.u32 %s1552, 4
          %s1568 = int_to_ptr.vmem [resolvable:$true] %s1567
          %1573 = dma.vmem_to_hbm [thread:$0]  %s1568, 2048, %s1566, %s1549, 128, 128, 8
        $region88: #{tpu_custom_call.1} parent=59 // pred_fallthru
          _
        // Predicated region
        $region89: #{tpu_custom_call.1} parent=59 // pred_check
          %p1574 = pneg %p301
        $region90: #{tpu_custom_call.1} parent=59 // pred_check_branch
          %1576 = sbr.rel (%p1574) target = $region92
        $region91: #{tpu_custom_call.1} parent=59 // pred_region
          %s1577 = smul.u32 16, %s37
          %s1579 = ssub.s32 4096, 4096
          %1580 = vsyncadd %s1554, %s1579
          %s1581 = smul.addr %s1577, 2
          %s1582 = smul.addr %s1581, 128
          %s1583 = scalar_lea.hbm %s11, %s1582
          %s1584 = sshll.u32 %s1557, 4
          %s1585 = int_to_ptr.vmem [resolvable:$true] %s1584
          %1590 = dma.vmem_to_hbm [thread:$0]  %s1585, 4096, %s1583, %s1554, 256, 256, 16
        $region92: #{tpu_custom_call.1} parent=59 // pred_fallthru
          _
      $region60: #{tpu_custom_call.1} parent=5 // pred_fallthru
        _
      %p1591 = scmp.le.s32.totalorder 2, %s32
      // Predicated region
      $region93: #{tpu_custom_call.1} parent=5 // pred_check
        %p1592 = pneg %p1591
      $region94: #{tpu_custom_call.1} parent=5 // pred_check_branch
        %1594 = sbr.rel (%p1592) target = $region96
      $region95: #{tpu_custom_call.1} parent=5 // pred_region
        %s1595 = ssub.s32 %s32, 2
        // Predicated region
        $region97: #{tpu_custom_call.1} parent=95 // pred_check
          %p1596 = pneg %p281
        $region98: #{tpu_custom_call.1} parent=95 // pred_check_branch
          %1598 = sbr.rel (%p1596) target = $region100
        $region99: #{tpu_custom_call.1} parent=95 // pred_region
          %s1599 = sand.u32 %s266, 1
          %s1600 = scalar_lea.sflag [#allocation4], %s1599
          %s1601 = sand.u32 %s266, 1
          %s1602 = smul.addr %s1601, 128
          %s1603 = scalar_lea.vmem [#allocation13], %s1602
          %1604 = dma.done %s1600, 2048
        $region100: #{tpu_custom_call.1} parent=95 // pred_fallthru
          _
        // Predicated region
        $region101: #{tpu_custom_call.1} parent=95 // pred_check
          %p1605 = pneg %p307
        $region102: #{tpu_custom_call.1} parent=95 // pred_check_branch
          %1607 = sbr.rel (%p1605) target = $region104
        $region103: #{tpu_custom_call.1} parent=95 // pred_region
          %s1608 = sand.u32 %s292, 1
          %s1609 = scalar_lea.sflag [#allocation15], %s1608
          %s1610 = sand.u32 %s292, 1
          %s1611 = smul.addr %s1610, 256
          %s1612 = scalar_lea.vmem [#allocation14], %s1611
          %1613 = dma.done %s1609, 4096
        $region104: #{tpu_custom_call.1} parent=95 // pred_fallthru
          _
      $region96: #{tpu_custom_call.1} parent=5 // pred_fallthru
        _
    $region6: #{tpu_custom_call.1} parent=1 // loop_footer
      %s36 = sadd.s32 1, %s32
    $region7: #{tpu_custom_call.1} parent=1 // loop_footer_branch
      %31 = sbr.rel target = $region3
    $region8: #{tpu_custom_call.1} parent=1 // loop_exit
      _
    %1614 = vsyncpa [#allocation3], 1
    %s1615 = scalar_lea.sflag [#allocation3], 1
    %1616 = vsyncpa %s1615, 1
    %1617 = vsyncpa [#allocation6], 1
    %s1618 = scalar_lea.sflag [#allocation6], 1
    %1619 = vsyncpa %s1618, 1
    %1620 = vsyncpa [#allocation9], 1
    %1621 = vsyncpa [#allocation12], 1
    %1622 = vsyncpa [#allocation4], 1
    %s1623 = scalar_lea.sflag [#allocation4], 1
    %1624 = vsyncpa %s1623, 1
    %1625 = vsyncpa [#allocation15], 1
    %s1626 = scalar_lea.sflag [#allocation15], 1
    %1627 = vsyncpa %s1626, 1

</llo_original>
